<compile_context>
chip_gen: v7x
topology: tpu7x:2x2x1
jax: 0.10.0
libtpu: 0.0.40
codegen_flags: <defaults>
</compile_context>

<pallas_src>
import functools

import jax
import jax.numpy as jnp
from jax.experimental import pallas as pl
from jax.experimental.pallas import tpu as pltpu


def _lstm_head_kernel(x_ref, wih_ref, b_ref, wf_ref, bl_ref,
                      out_ref, c_ref, rg_ref,
                      *, hidden_size, batch, t_chunk):
    """One grid step = one chunk of `t_chunk` timesteps.

    x_ref  : (t_chunk*B, I)      flattened chunk of inputs
    wih_ref: (I, 4H)             W_ih^T
    b_ref  : (1, 4H)             b_ih + b_hh
    wf_ref : (H, 4H + P)         [W_hh^T | padded W_lin^T]   (P = 128-padded head)
    bl_ref : (1, P)              linear bias, padding lanes = -1e30
    out_ref: (t_chunk, B, P)     log-softmax outputs (lane-dense, padded)
    c_ref  : (B, H)   scratch    carried cell state
    rg_ref : (B, 4H)  scratch    carried h_{t-1} @ W_hh^T
    """
    H = hidden_size
    B = batch

    # Zero-init carried state at the first chunk (PyTorch default h0 = c0 = 0;
    # rg = h0 @ W_hh^T = 0 as well).
    @pl.when(pl.program_id(0) == 0)
    def _():
        c_ref[...] = jnp.zeros_like(c_ref)
        rg_ref[...] = jnp.zeros_like(rg_ref)

    w_dtype = wf_ref.dtype  # f32 by default; bf16 optional for v6e/v7x MXU.

    # Hoisted input projection for the whole chunk: one large-M MXU matmul,
    # LSTM bias folded in once (not per step).
    xg = jnp.dot(x_ref[...].astype(w_dtype), wih_ref[...],
                 preferred_element_type=jnp.float32) + b_ref[...]   # (t_chunk*B, 4H) f32

    bl = bl_ref[...]          # (1, P), loaded once per chunk

    c = c_ref[...]            # (B, H)  f32
    rg = rg_ref[...]          # (B, 4H) f32

    # Small static chunk -> fully unrolled at trace time; all slices static.
    # TODO(synk): for very long chunks switch to lax.fori_loop with dynamic
    # first-axis ref indexing to bound code size.
    for t in range(t_chunk):
        gates = xg[t * B:(t + 1) * B, :] + rg          # (B, 4H)  f32
        # Activations on the full 4H(=128)-lane vreg, then slice per gate slot.
        sg = jax.nn.sigmoid(gates)
        th = jnp.tanh(gates)
        i_g = sg[:, 0 * H:1 * H]
        f_g = sg[:, 1 * H:2 * H]
        g_g = th[:, 2 * H:3 * H]
        o_g = sg[:, 3 * H:4 * H]

        c = f_g * c + i_g * g_g
        h = o_g * jnp.tanh(c)                          # (B, H) f32

        # Single fused MXU push: next-step recurrent contribution + logits.
        fused = jnp.dot(h.astype(w_dtype), wf_ref[...],
                        preferred_element_type=jnp.float32)          # (B, 4H+P)
        rg = fused[:, :4 * H]

        # Dropout (eval mode) == identity.  Linear bias + LogSoftmax(dim=1);
        # padded lanes carry -1e30 bias so they contribute exp(..)=0.
        logits = fused[:, 4 * H:] + bl                 # (B, P)
        m = jnp.max(logits, axis=-1, keepdims=True)
        sh = logits - m
        lse = jnp.log(jnp.sum(jnp.exp(sh), axis=-1, keepdims=True))
        out_ref[t] = (sh - lse).astype(out_ref.dtype)

    c_ref[...] = c
    rg_ref[...] = rg


def lstm_model_forward(x, params, *, t_chunk=None, weights_dtype=None):
    """x: (seq_len, batch, input_size) f32 -> (seq_len*batch, output_size) f32.

    weights_dtype: optionally jnp.bfloat16 on v6e/v7x for 2x MXU throughput
    (f32 accumulation and f32 elementwise math are kept either way).
    """
    S, B, I = x.shape
    wih_t = params["wih_t"]        # (I, 4H)  == weight_ih_l0.T
    whh_t = params["whh_t"]        # (H, 4H)  == weight_hh_l0.T
    b_lstm = params["b_lstm"]      # (1, 4H)  == bias_ih_l0 + bias_hh_l0
    wl_t = params["wl_t"]          # (H, O)   == linear.weight.T
    bl = params["bl"]              # (1, O)   == linear.bias
    H = whh_t.shape[0]
    O = wl_t.shape[1]
    P = 128 * pl.cdiv(O, 128)      # lane-dense (padded) head width

    if t_chunk is None:
        t_chunk = S                # small sequences: one grid step total
    assert S % t_chunk == 0, "seq_len must be divisible by t_chunk"
    n_chunks = S // t_chunk

    # Fused head weight [W_hh^T | pad(W_lin^T)] and padded head bias.
    wl_pad = jnp.zeros((H, P), jnp.float32).at[:, :O].set(wl_t.astype(jnp.float32))
    w_fused = jnp.concatenate([whh_t.astype(jnp.float32), wl_pad], axis=1)  # (H, 4H+P)
    bl_pad = jnp.full((1, P), -1e30, jnp.float32).at[:, :O].set(bl.astype(jnp.float32))

    wih_c = wih_t.astype(jnp.float32)
    if weights_dtype is not None:
        wih_c = wih_c.astype(weights_dtype)
        w_fused = w_fused.astype(weights_dtype)

    x2d = x.reshape(S * B, I)

    kernel = functools.partial(_lstm_head_kernel,
                               hidden_size=H, batch=B, t_chunk=t_chunk)

    out = pl.pallas_call(
        kernel,
        out_shape=jax.ShapeDtypeStruct((S, B, P), jnp.float32),
        grid_spec=pltpu.PrefetchScalarGridSpec(
            num_scalar_prefetch=0,
            grid=(n_chunks,),
            in_specs=[
                pl.BlockSpec((t_chunk * B, I), lambda c: (c, 0)),      # x chunk
                pl.BlockSpec((I, 4 * H), lambda c: (0, 0)),            # W_ih^T
                pl.BlockSpec((1, 4 * H), lambda c: (0, 0)),            # b_ih + b_hh
                pl.BlockSpec((H, 4 * H + P), lambda c: (0, 0)),        # fused W
                pl.BlockSpec((1, P), lambda c: (0, 0)),                # padded b_lin
            ],
            out_specs=pl.BlockSpec((t_chunk, B, P), lambda c: (c, 0, 0)),
            scratch_shapes=[
                pltpu.VMEM((B, H), jnp.float32),        # c state carry
                pltpu.VMEM((B, 4 * H), jnp.float32),    # h @ W_hh^T carry
            ],
        ),
        compiler_params=pltpu.CompilerParams(
            dimension_semantics=("arbitrary",),          # recurrence over time
        ),
    )(x2d, wih_c, b_lstm.astype(jnp.float32), w_fused, bl_pad)

    # Rows ordered (t, b) to match .view(-1, hidden); drop padded head lanes.
    return out.reshape(S * B, P)[:, :O]


def lstm_model_reference(x, params):
    """Pure-JAX reference (same math, lax.scan over time)."""
    S, B, _ = x.shape
    H = params["whh_t"].shape[0]

    def cell(carry, x_t):
        h, c = carry
        gates = (x_t @ params["wih_t"] + h @ params["whh_t"] + params["b_lstm"][0])
        i = jax.nn.sigmoid(gates[:, 0 * H:1 * H])
        f = jax.nn.sigmoid(gates[:, 1 * H:2 * H])
        g = jnp.tanh(gates[:, 2 * H:3 * H])
        o = jax.nn.sigmoid(gates[:, 3 * H:4 * H])
        c = f * c + i * g
        h = o * jnp.tanh(c)
        return (h, c), h

    (_, _), hs = jax.lax.scan(cell, (jnp.zeros((B, H), jnp.float32),
                                     jnp.zeros((B, H), jnp.float32)), x)
    logits = hs.reshape(S * B, H) @ params["wl_t"] + params["bl"][0]
    return jax.nn.log_softmax(logits, axis=1)


def init_params(key, input_size, hidden_size, output_size):
    """Deterministic synthetic parameters matching nn.LSTM / nn.Linear shapes."""
    ks = jax.random.split(key, 6)
    H, I, O = hidden_size, input_size, output_size
    bound = 1.0 / jnp.sqrt(H)
    w_ih = jax.random.uniform(ks[0], (4 * H, I), jnp.float32, -bound, bound)
    w_hh = jax.random.uniform(ks[1], (4 * H, H), jnp.float32, -bound, bound)
    b_ih = jax.random.uniform(ks[2], (4 * H,), jnp.float32, -bound, bound)
    b_hh = jax.random.uniform(ks[3], (4 * H,), jnp.float32, -bound, bound)
    w_lin = jax.random.uniform(ks[4], (O, H), jnp.float32, -bound, bound)
    b_lin = jax.random.uniform(ks[5], (O,), jnp.float32, -bound, bound)
    return {
        "wih_t": w_ih.T,                       # (I, 4H)
        "whh_t": w_hh.T,                       # (H, 4H)
        "b_lstm": (b_ih + b_hh)[None, :],      # (1, 4H)
        "wl_t": w_lin.T,                       # (H, O)
        "bl": b_lin[None, :],                  # (1, O)
    }


if __name__ == "__main__":
    SEQ, BATCH = 8, 2
    INPUT_SIZE, HIDDEN_SIZE, OUTPUT_SIZE = 4, 32, 8

    key = jax.random.PRNGKey(0)
    k_x, k_p = jax.random.split(key)
    x = jax.random.normal(k_x, (SEQ, BATCH, INPUT_SIZE), jnp.float32)
    params = init_params(k_p, INPUT_SIZE, HIDDEN_SIZE, OUTPUT_SIZE)

    out = lstm_model_forward(x, params)
    jax.block_until_ready(out)
    assert out.shape == (SEQ * BATCH, OUTPUT_SIZE)

    ref = lstm_model_reference(x, params)
    assert bool(jnp.all(jnp.isfinite(out)))
    assert bool(jnp.allclose(out, ref, atol=2e-3, rtol=2e-3))

    print("KERNEL_OK")
</pallas_src>

<mosaic_0001>
module attributes {stable_mosaic.version = 11 : i64} {
  func.func @_lstm_head_kernel(%arg0: i32, %arg1: memref<16x4xf32, #tpu.memory_space<vmem>>, %arg2: memref<4x128xf32, #tpu.memory_space<vmem>>, %arg3: memref<1x128xf32, #tpu.memory_space<vmem>>, %arg4: memref<32x256xf32, #tpu.memory_space<vmem>>, %arg5: memref<1x128xf32, #tpu.memory_space<vmem>>, %arg6: memref<8x2x128xf32, #tpu.memory_space<vmem>>, %arg7: memref<2x32xf32, #tpu.memory_space<vmem>>, %arg8: memref<2x128xf32, #tpu.memory_space<vmem>>) attributes {dimension_semantics = [#tpu.dimension_semantics<arbitrary>], iteration_bounds = array<i64: 1>, scalar_prefetch = 0 : i64, scratch_operands = 2 : i64, tpu.core_type = #tpu.core_type<tc>, window_params = [{transform_indices = @transform_0, window_bounds = array<i64: 16, 4>}, {pipeline_mode = #tpu.pipeline_mode<synchronous>, transform_indices = @transform_1, window_bounds = array<i64: 4, 128>}, {pipeline_mode = #tpu.pipeline_mode<synchronous>, transform_indices = @transform_2, window_bounds = array<i64: 1, 128>}, {pipeline_mode = #tpu.pipeline_mode<synchronous>, transform_indices = @transform_3, window_bounds = array<i64: 32, 256>}, {pipeline_mode = #tpu.pipeline_mode<synchronous>, transform_indices = @transform_4, window_bounds = array<i64: 1, 128>}, {transform_indices = @transform_5, window_bounds = array<i64: 8, 2, 128>}]} {
    %c0_i32 = arith.constant 0 : i32
    %0 = arith.cmpi eq, %arg0, %c0_i32 : i32
    %1 = arith.extui %0 : i1 to i32
    %c0_i32_0 = arith.constant 0 : i32
    %2 = arith.cmpi ne, %1, %c0_i32_0 : i32
    scf.if %2 {
      %cst_81 = arith.constant 0.000000e+00 : f32
      %302 = vector.broadcast %cst_81 : f32 to vector<2x32xf32>
      %c0_82 = arith.constant 0 : index
      %c0_83 = arith.constant 0 : index
      %303 = vector.load %arg7[%c0_82, %c0_83] : memref<2x32xf32, #tpu.memory_space<vmem>>, vector<2x32xf32>
      tpu.vector_store %arg7[%c0_82, %c0_83], %302 {strides = array<i32>} : memref<2x32xf32, #tpu.memory_space<vmem>>, vector<2x32xf32>,
      %cst_84 = arith.constant 0.000000e+00 : f32
      %304 = vector.broadcast %cst_84 : f32 to vector<2x128xf32>
      %c0_85 = arith.constant 0 : index
      %c0_86 = arith.constant 0 : index
      %305 = vector.load %arg8[%c0_85, %c0_86] : memref<2x128xf32, #tpu.memory_space<vmem>>, vector<2x128xf32>
      tpu.vector_store %arg8[%c0_85, %c0_86], %304 {strides = array<i32>} : memref<2x128xf32, #tpu.memory_space<vmem>>, vector<2x128xf32>,
    } else {
    }
    %c0 = arith.constant 0 : index
    %c0_1 = arith.constant 0 : index
    %3 = vector.load %arg1[%c0, %c0_1] : memref<16x4xf32, #tpu.memory_space<vmem>>, vector<16x4xf32>
    %c0_2 = arith.constant 0 : index
    %c0_3 = arith.constant 0 : index
    %4 = vector.load %arg2[%c0_2, %c0_3] : memref<4x128xf32, #tpu.memory_space<vmem>>, vector<4x128xf32>
    %cst = arith.constant dense<0.000000e+00> : vector<16x128xf32>
    %5 = tpu.matmul %3, %4, %cst {dimension_numbers = #tpu.dot_dimension_numbers<[1], [0], [0], [1], [0, 0, 1, 1], [], []>} : vector<16x4xf32>, vector<4x128xf32>, vector<16x128xf32> -> vector<16x128xf32>
    %c0_4 = arith.constant 0 : index
    %c0_5 = arith.constant 0 : index
    %6 = vector.load %arg3[%c0_4, %c0_5] : memref<1x128xf32, #tpu.memory_space<vmem>>, vector<1x128xf32>
    %7 = vector.broadcast %6 : vector<1x128xf32> to vector<16x128xf32>
    %8 = arith.addf %5, %7 : vector<16x128xf32>
    %c0_6 = arith.constant 0 : index
    %c0_7 = arith.constant 0 : index
    %9 = vector.load %arg5[%c0_6, %c0_7] : memref<1x128xf32, #tpu.memory_space<vmem>>, vector<1x128xf32>
    %c0_8 = arith.constant 0 : index
    %c0_9 = arith.constant 0 : index
    %10 = vector.load %arg7[%c0_8, %c0_9] : memref<2x32xf32, #tpu.memory_space<vmem>>, vector<2x32xf32>
    %c0_10 = arith.constant 0 : index
    %c0_11 = arith.constant 0 : index
    %11 = vector.load %arg8[%c0_10, %c0_11] : memref<2x128xf32, #tpu.memory_space<vmem>>, vector<2x128xf32>
    %12 = vector.extract_strided_slice %8 {offsets = [0, 0], sizes = [2, 128], strides = [1, 1]} : vector<16x128xf32> to vector<2x128xf32>
    %13 = arith.addf %12, %11 : vector<2x128xf32>
    %14 = arith.negf %13 : vector<2x128xf32>
    %15 = math.exp %14 : vector<2x128xf32>
    %cst_12 = arith.constant 1.000000e+00 : f32
    %16 = vector.broadcast %cst_12 : f32 to vector<2x128xf32>
    %17 = arith.addf %16, %15 : vector<2x128xf32>
    %18 = arith.divf %16, %17 : vector<2x128xf32>
    %19 = math.tanh %13 : vector<2x128xf32>
    %20 = vector.extract_strided_slice %18 {offsets = [0, 0], sizes = [2, 32], strides = [1, 1]} : vector<2x128xf32> to vector<2x32xf32>
    %21 = vector.extract_strided_slice %18 {offsets = [0, 32], sizes = [2, 32], strides = [1, 1]} : vector<2x128xf32> to vector<2x32xf32>
    %22 = vector.extract_strided_slice %19 {offsets = [0, 64], sizes = [2, 32], strides = [1, 1]} : vector<2x128xf32> to vector<2x32xf32>
    %23 = vector.extract_strided_slice %18 {offsets = [0, 96], sizes = [2, 32], strides = [1, 1]} : vector<2x128xf32> to vector<2x32xf32>
    %24 = arith.mulf %21, %10 : vector<2x32xf32>
    %25 = arith.mulf %20, %22 : vector<2x32xf32>
    %26 = arith.addf %24, %25 : vector<2x32xf32>
    %27 = math.tanh %26 : vector<2x32xf32>
    %28 = arith.mulf %23, %27 : vector<2x32xf32>
    %c0_13 = arith.constant 0 : index
    %c0_14 = arith.constant 0 : index
    %29 = vector.load %arg4[%c0_13, %c0_14] : memref<32x256xf32, #tpu.memory_space<vmem>>, vector<32x256xf32>
    %cst_15 = arith.constant dense<0.000000e+00> : vector<2x256xf32>
    %30 = tpu.matmul %28, %29, %cst_15 {dimension_numbers = #tpu.dot_dimension_numbers<[1], [0], [0], [1], [0, 0, 1, 1], [], []>} : vector<2x32xf32>, vector<32x256xf32>, vector<2x256xf32> -> vector<2x256xf32>
    %31 = vector.extract_strided_slice %30 {offsets = [0, 0], sizes = [2, 128], strides = [1, 1]} : vector<2x256xf32> to vector<2x128xf32>
    %32 = vector.extract_strided_slice %30 {offsets = [0, 128], sizes = [2, 128], strides = [1, 1]} : vector<2x256xf32> to vector<2x128xf32>
    %33 = vector.broadcast %9 : vector<1x128xf32> to vector<2x128xf32>
    %34 = arith.addf %32, %33 : vector<2x128xf32>
    %cst_16 = arith.constant dense<0xFF800000> : vector<2xf32>
    %35 = vector.multi_reduction <maximumf>, %34, %cst_16 [1] : vector<2x128xf32> to vector<2xf32>
    %36 = vector.shape_cast %35 : vector<2xf32> to vector<2x1xf32>
    %37 = vector.broadcast %36 : vector<2x1xf32> to vector<2x128xf32>
    %38 = arith.subf %34, %37 : vector<2x128xf32>
    %39 = math.exp %38 : vector<2x128xf32>
    %cst_17 = arith.constant dense<0.000000e+00> : vector<2xf32>
    %40 = vector.multi_reduction <add>, %39, %cst_17 [1] : vector<2x128xf32> to vector<2xf32>
    %41 = vector.shape_cast %40 : vector<2xf32> to vector<2x1xf32>
    %42 = math.log %41 : vector<2x1xf32>
    %43 = vector.broadcast %42 : vector<2x1xf32> to vector<2x128xf32>
    %44 = arith.subf %38, %43 : vector<2x128xf32>
    %c0_18 = arith.constant 0 : index
    %c0_19 = arith.constant 0 : index
    %c0_20 = arith.constant 0 : index
    %45 = vector.load %arg6[%c0_18, %c0_19, %c0_20] : memref<8x2x128xf32, #tpu.memory_space<vmem>>, vector<1x2x128xf32>
    %46 = vector.shape_cast %45 : vector<1x2x128xf32> to vector<2x128xf32>
    %47 = vector.shape_cast %44 : vector<2x128xf32> to vector<1x2x128xf32>
    tpu.vector_store %arg6[%c0_18, %c0_19, %c0_20], %47 {strides = array<i32>} : memref<8x2x128xf32, #tpu.memory_space<vmem>>, vector<1x2x128xf32>,
    %48 = vector.extract_strided_slice %8 {offsets = [2, 0], sizes = [2, 128], strides = [1, 1]} : vector<16x128xf32> to vector<2x128xf32>
    %49 = arith.addf %48, %31 : vector<2x128xf32>
    %50 = arith.negf %49 : vector<2x128xf32>
    %51 = math.exp %50 : vector<2x128xf32>
    %cst_21 = arith.constant 1.000000e+00 : f32
    %52 = vector.broadcast %cst_21 : f32 to vector<2x128xf32>
    %53 = arith.addf %52, %51 : vector<2x128xf32>
    %54 = arith.divf %52, %53 : vector<2x128xf32>
    %55 = math.tanh %49 : vector<2x128xf32>
    %56 = vector.extract_strided_slice %54 {offsets = [0, 0], sizes = [2, 32], strides = [1, 1]} : vector<2x128xf32> to vector<2x32xf32>
    %57 = vector.extract_strided_slice %54 {offsets = [0, 32], sizes = [2, 32], strides = [1, 1]} : vector<2x128xf32> to vector<2x32xf32>
    %58 = vector.extract_strided_slice %55 {offsets = [0, 64], sizes = [2, 32], strides = [1, 1]} : vector<2x128xf32> to vector<2x32xf32>
    %59 = vector.extract_strided_slice %54 {offsets = [0, 96], sizes = [2, 32], strides = [1, 1]} : vector<2x128xf32> to vector<2x32xf32>
    %60 = arith.mulf %57, %26 : vector<2x32xf32>
    %61 = arith.mulf %56, %58 : vector<2x32xf32>
    %62 = arith.addf %60, %61 : vector<2x32xf32>
    %63 = math.tanh %62 : vector<2x32xf32>
    %64 = arith.mulf %59, %63 : vector<2x32xf32>
    %c0_22 = arith.constant 0 : index
    %c0_23 = arith.constant 0 : index
    %65 = vector.load %arg4[%c0_22, %c0_23] : memref<32x256xf32, #tpu.memory_space<vmem>>, vector<32x256xf32>
    %cst_24 = arith.constant dense<0.000000e+00> : vector<2x256xf32>
    %66 = tpu.matmul %64, %65, %cst_24 {dimension_numbers = #tpu.dot_dimension_numbers<[1], [0], [0], [1], [0, 0, 1, 1], [], []>} : vector<2x32xf32>, vector<32x256xf32>, vector<2x256xf32> -> vector<2x256xf32>
    %67 = vector.extract_strided_slice %66 {offsets = [0, 0], sizes = [2, 128], strides = [1, 1]} : vector<2x256xf32> to vector<2x128xf32>
    %68 = vector.extract_strided_slice %66 {offsets = [0, 128], sizes = [2, 128], strides = [1, 1]} : vector<2x256xf32> to vector<2x128xf32>
    %69 = vector.broadcast %9 : vector<1x128xf32> to vector<2x128xf32>
    %70 = arith.addf %68, %69 : vector<2x128xf32>
    %cst_25 = arith.constant dense<0xFF800000> : vector<2xf32>
    %71 = vector.multi_reduction <maximumf>, %70, %cst_25 [1] : vector<2x128xf32> to vector<2xf32>
    %72 = vector.shape_cast %71 : vector<2xf32> to vector<2x1xf32>
    %73 = vector.broadcast %72 : vector<2x1xf32> to vector<2x128xf32>
    %74 = arith.subf %70, %73 : vector<2x128xf32>
    %75 = math.exp %74 : vector<2x128xf32>
    %cst_26 = arith.constant dense<0.000000e+00> : vector<2xf32>
    %76 = vector.multi_reduction <add>, %75, %cst_26 [1] : vector<2x128xf32> to vector<2xf32>
    %77 = vector.shape_cast %76 : vector<2xf32> to vector<2x1xf32>
    %78 = math.log %77 : vector<2x1xf32>
    %79 = vector.broadcast %78 : vector<2x1xf32> to vector<2x128xf32>
    %80 = arith.subf %74, %79 : vector<2x128xf32>
    %c1 = arith.constant 1 : index
    %c0_27 = arith.constant 0 : index
    %c0_28 = arith.constant 0 : index
    %81 = vector.load %arg6[%c1, %c0_27, %c0_28] : memref<8x2x128xf32, #tpu.memory_space<vmem>>, vector<1x2x128xf32>
    %82 = vector.shape_cast %81 : vector<1x2x128xf32> to vector<2x128xf32>
    %83 = vector.shape_cast %80 : vector<2x128xf32> to vector<1x2x128xf32>
    tpu.vector_store %arg6[%c1, %c0_27, %c0_28], %83 {strides = array<i32>} : memref<8x2x128xf32, #tpu.memory_space<vmem>>, vector<1x2x128xf32>,
    %84 = vector.extract_strided_slice %8 {offsets = [4, 0], sizes = [2, 128], strides = [1, 1]} : vector<16x128xf32> to vector<2x128xf32>
    %85 = arith.addf %84, %67 : vector<2x128xf32>
    %86 = arith.negf %85 : vector<2x128xf32>
    %87 = math.exp %86 : vector<2x128xf32>
    %cst_29 = arith.constant 1.000000e+00 : f32
    %88 = vector.broadcast %cst_29 : f32 to vector<2x128xf32>
    %89 = arith.addf %88, %87 : vector<2x128xf32>
    %90 = arith.divf %88, %89 : vector<2x128xf32>
    %91 = math.tanh %85 : vector<2x128xf32>
    %92 = vector.extract_strided_slice %90 {offsets = [0, 0], sizes = [2, 32], strides = [1, 1]} : vector<2x128xf32> to vector<2x32xf32>
    %93 = vector.extract_strided_slice %90 {offsets = [0, 32], sizes = [2, 32], strides = [1, 1]} : vector<2x128xf32> to vector<2x32xf32>
    %94 = vector.extract_strided_slice %91 {offsets = [0, 64], sizes = [2, 32], strides = [1, 1]} : vector<2x128xf32> to vector<2x32xf32>
    %95 = vector.extract_strided_slice %90 {offsets = [0, 96], sizes = [2, 32], strides = [1, 1]} : vector<2x128xf32> to vector<2x32xf32>
    %96 = arith.mulf %93, %62 : vector<2x32xf32>
    %97 = arith.mulf %92, %94 : vector<2x32xf32>
    %98 = arith.addf %96, %97 : vector<2x32xf32>
    %99 = math.tanh %98 : vector<2x32xf32>
    %100 = arith.mulf %95, %99 : vector<2x32xf32>
    %c0_30 = arith.constant 0 : index
    %c0_31 = arith.constant 0 : index
    %101 = vector.load %arg4[%c0_30, %c0_31] : memref<32x256xf32, #tpu.memory_space<vmem>>, vector<32x256xf32>
    %cst_32 = arith.constant dense<0.000000e+00> : vector<2x256xf32>
    %102 = tpu.matmul %100, %101, %cst_32 {dimension_numbers = #tpu.dot_dimension_numbers<[1], [0], [0], [1], [0, 0, 1, 1], [], []>} : vector<2x32xf32>, vector<32x256xf32>, vector<2x256xf32> -> vector<2x256xf32>
    %103 = vector.extract_strided_slice %102 {offsets = [0, 0], sizes = [2, 128], strides = [1, 1]} : vector<2x256xf32> to vector<2x128xf32>
    %104 = vector.extract_strided_slice %102 {offsets = [0, 128], sizes = [2, 128], strides = [1, 1]} : vector<2x256xf32> to vector<2x128xf32>
    %105 = vector.broadcast %9 : vector<1x128xf32> to vector<2x128xf32>
    %106 = arith.addf %104, %105 : vector<2x128xf32>
    %cst_33 = arith.constant dense<0xFF800000> : vector<2xf32>
    %107 = vector.multi_reduction <maximumf>, %106, %cst_33 [1] : vector<2x128xf32> to vector<2xf32>
    %108 = vector.shape_cast %107 : vector<2xf32> to vector<2x1xf32>
    %109 = vector.broadcast %108 : vector<2x1xf32> to vector<2x128xf32>
    %110 = arith.subf %106, %109 : vector<2x128xf32>
    %111 = math.exp %110 : vector<2x128xf32>
    %cst_34 = arith.constant dense<0.000000e+00> : vector<2xf32>
    %112 = vector.multi_reduction <add>, %111, %cst_34 [1] : vector<2x128xf32> to vector<2xf32>
    %113 = vector.shape_cast %112 : vector<2xf32> to vector<2x1xf32>
    %114 = math.log %113 : vector<2x1xf32>
    %115 = vector.broadcast %114 : vector<2x1xf32> to vector<2x128xf32>
    %116 = arith.subf %110, %115 : vector<2x128xf32>
    %c2 = arith.constant 2 : index
    %c0_35 = arith.constant 0 : index
    %c0_36 = arith.constant 0 : index
    %117 = vector.load %arg6[%c2, %c0_35, %c0_36] : memref<8x2x128xf32, #tpu.memory_space<vmem>>, vector<1x2x128xf32>
    %118 = vector.shape_cast %117 : vector<1x2x128xf32> to vector<2x128xf32>
    %119 = vector.shape_cast %116 : vector<2x128xf32> to vector<1x2x128xf32>
    tpu.vector_store %arg6[%c2, %c0_35, %c0_36], %119 {strides = array<i32>} : memref<8x2x128xf32, #tpu.memory_space<vmem>>, vector<1x2x128xf32>,
    %120 = vector.extract_strided_slice %8 {offsets = [6, 0], sizes = [2, 128], strides = [1, 1]} : vector<16x128xf32> to vector<2x128xf32>
    %121 = arith.addf %120, %103 : vector<2x128xf32>
    %122 = arith.negf %121 : vector<2x128xf32>
    %123 = math.exp %122 : vector<2x128xf32>
    %cst_37 = arith.constant 1.000000e+00 : f32
    %124 = vector.broadcast %cst_37 : f32 to vector<2x128xf32>
    %125 = arith.addf %124, %123 : vector<2x128xf32>
    %126 = arith.divf %124, %125 : vector<2x128xf32>
    %127 = math.tanh %121 : vector<2x128xf32>
    %128 = vector.extract_strided_slice %126 {offsets = [0, 0], sizes = [2, 32], strides = [1, 1]} : vector<2x128xf32> to vector<2x32xf32>
    %129 = vector.extract_strided_slice %126 {offsets = [0, 32], sizes = [2, 32], strides = [1, 1]} : vector<2x128xf32> to vector<2x32xf32>
    %130 = vector.extract_strided_slice %127 {offsets = [0, 64], sizes = [2, 32], strides = [1, 1]} : vector<2x128xf32> to vector<2x32xf32>
    %131 = vector.extract_strided_slice %126 {offsets = [0, 96], sizes = [2, 32], strides = [1, 1]} : vector<2x128xf32> to vector<2x32xf32>
    %132 = arith.mulf %129, %98 : vector<2x32xf32>
    %133 = arith.mulf %128, %130 : vector<2x32xf32>
    %134 = arith.addf %132, %133 : vector<2x32xf32>
    %135 = math.tanh %134 : vector<2x32xf32>
    %136 = arith.mulf %131, %135 : vector<2x32xf32>
    %c0_38 = arith.constant 0 : index
    %c0_39 = arith.constant 0 : index
    %137 = vector.load %arg4[%c0_38, %c0_39] : memref<32x256xf32, #tpu.memory_space<vmem>>, vector<32x256xf32>
    %cst_40 = arith.constant dense<0.000000e+00> : vector<2x256xf32>
    %138 = tpu.matmul %136, %137, %cst_40 {dimension_numbers = #tpu.dot_dimension_numbers<[1], [0], [0], [1], [0, 0, 1, 1], [], []>} : vector<2x32xf32>, vector<32x256xf32>, vector<2x256xf32> -> vector<2x256xf32>
    %139 = vector.extract_strided_slice %138 {offsets = [0, 0], sizes = [2, 128], strides = [1, 1]} : vector<2x256xf32> to vector<2x128xf32>
    %140 = vector.extract_strided_slice %138 {offsets = [0, 128], sizes = [2, 128], strides = [1, 1]} : vector<2x256xf32> to vector<2x128xf32>
    %141 = vector.broadcast %9 : vector<1x128xf32> to vector<2x128xf32>
    %142 = arith.addf %140, %141 : vector<2x128xf32>
    %cst_41 = arith.constant dense<0xFF800000> : vector<2xf32>
    %143 = vector.multi_reduction <maximumf>, %142, %cst_41 [1] : vector<2x128xf32> to vector<2xf32>
    %144 = vector.shape_cast %143 : vector<2xf32> to vector<2x1xf32>
    %145 = vector.broadcast %144 : vector<2x1xf32> to vector<2x128xf32>
    %146 = arith.subf %142, %145 : vector<2x128xf32>
    %147 = math.exp %146 : vector<2x128xf32>
    %cst_42 = arith.constant dense<0.000000e+00> : vector<2xf32>
    %148 = vector.multi_reduction <add>, %147, %cst_42 [1] : vector<2x128xf32> to vector<2xf32>
    %149 = vector.shape_cast %148 : vector<2xf32> to vector<2x1xf32>
    %150 = math.log %149 : vector<2x1xf32>
    %151 = vector.broadcast %150 : vector<2x1xf32> to vector<2x128xf32>
    %152 = arith.subf %146, %151 : vector<2x128xf32>
    %c3 = arith.constant 3 : index
    %c0_43 = arith.constant 0 : index
    %c0_44 = arith.constant 0 : index
    %153 = vector.load %arg6[%c3, %c0_43, %c0_44] : memref<8x2x128xf32, #tpu.memory_space<vmem>>, vector<1x2x128xf32>
    %154 = vector.shape_cast %153 : vector<1x2x128xf32> to vector<2x128xf32>
    %155 = vector.shape_cast %152 : vector<2x128xf32> to vector<1x2x128xf32>
    tpu.vector_store %arg6[%c3, %c0_43, %c0_44], %155 {strides = array<i32>} : memref<8x2x128xf32, #tpu.memory_space<vmem>>, vector<1x2x128xf32>,
    %156 = vector.extract_strided_slice %8 {offsets = [8, 0], sizes = [2, 128], strides = [1, 1]} : vector<16x128xf32> to vector<2x128xf32>
    %157 = arith.addf %156, %139 : vector<2x128xf32>
    %158 = arith.negf %157 : vector<2x128xf32>
    %159 = math.exp %158 : vector<2x128xf32>
    %cst_45 = arith.constant 1.000000e+00 : f32
    %160 = vector.broadcast %cst_45 : f32 to vector<2x128xf32>
    %161 = arith.addf %160, %159 : vector<2x128xf32>
    %162 = arith.divf %160, %161 : vector<2x128xf32>
    %163 = math.tanh %157 : vector<2x128xf32>
    %164 = vector.extract_strided_slice %162 {offsets = [0, 0], sizes = [2, 32], strides = [1, 1]} : vector<2x128xf32> to vector<2x32xf32>
    %165 = vector.extract_strided_slice %162 {offsets = [0, 32], sizes = [2, 32], strides = [1, 1]} : vector<2x128xf32> to vector<2x32xf32>
    %166 = vector.extract_strided_slice %163 {offsets = [0, 64], sizes = [2, 32], strides = [1, 1]} : vector<2x128xf32> to vector<2x32xf32>
    %167 = vector.extract_strided_slice %162 {offsets = [0, 96], sizes = [2, 32], strides = [1, 1]} : vector<2x128xf32> to vector<2x32xf32>
    %168 = arith.mulf %165, %134 : vector<2x32xf32>
    %169 = arith.mulf %164, %166 : vector<2x32xf32>
    %170 = arith.addf %168, %169 : vector<2x32xf32>
    %171 = math.tanh %170 : vector<2x32xf32>
    %172 = arith.mulf %167, %171 : vector<2x32xf32>
    %c0_46 = arith.constant 0 : index
    %c0_47 = arith.constant 0 : index
    %173 = vector.load %arg4[%c0_46, %c0_47] : memref<32x256xf32, #tpu.memory_space<vmem>>, vector<32x256xf32>
    %cst_48 = arith.constant dense<0.000000e+00> : vector<2x256xf32>
    %174 = tpu.matmul %172, %173, %cst_48 {dimension_numbers = #tpu.dot_dimension_numbers<[1], [0], [0], [1], [0, 0, 1, 1], [], []>} : vector<2x32xf32>, vector<32x256xf32>, vector<2x256xf32> -> vector<2x256xf32>
    %175 = vector.extract_strided_slice %174 {offsets = [0, 0], sizes = [2, 128], strides = [1, 1]} : vector<2x256xf32> to vector<2x128xf32>
    %176 = vector.extract_strided_slice %174 {offsets = [0, 128], sizes = [2, 128], strides = [1, 1]} : vector<2x256xf32> to vector<2x128xf32>
    %177 = vector.broadcast %9 : vector<1x128xf32> to vector<2x128xf32>
    %178 = arith.addf %176, %177 : vector<2x128xf32>
    %cst_49 = arith.constant dense<0xFF800000> : vector<2xf32>
    %179 = vector.multi_reduction <maximumf>, %178, %cst_49 [1] : vector<2x128xf32> to vector<2xf32>
    %180 = vector.shape_cast %179 : vector<2xf32> to vector<2x1xf32>
    %181 = vector.broadcast %180 : vector<2x1xf32> to vector<2x128xf32>
    %182 = arith.subf %178, %181 : vector<2x128xf32>
    %183 = math.exp %182 : vector<2x128xf32>
    %cst_50 = arith.constant dense<0.000000e+00> : vector<2xf32>
    %184 = vector.multi_reduction <add>, %183, %cst_50 [1] : vector<2x128xf32> to vector<2xf32>
    %185 = vector.shape_cast %184 : vector<2xf32> to vector<2x1xf32>
    %186 = math.log %185 : vector<2x1xf32>
    %187 = vector.broadcast %186 : vector<2x1xf32> to vector<2x128xf32>
    %188 = arith.subf %182, %187 : vector<2x128xf32>
    %c4 = arith.constant 4 : index
    %c0_51 = arith.constant 0 : index
    %c0_52 = arith.constant 0 : index
    %189 = vector.load %arg6[%c4, %c0_51, %c0_52] : memref<8x2x128xf32, #tpu.memory_space<vmem>>, vector<1x2x128xf32>
    %190 = vector.shape_cast %189 : vector<1x2x128xf32> to vector<2x128xf32>
    %191 = vector.shape_cast %188 : vector<2x128xf32> to vector<1x2x128xf32>
    tpu.vector_store %arg6[%c4, %c0_51, %c0_52], %191 {strides = array<i32>} : memref<8x2x128xf32, #tpu.memory_space<vmem>>, vector<1x2x128xf32>,
    %192 = vector.extract_strided_slice %8 {offsets = [10, 0], sizes = [2, 128], strides = [1, 1]} : vector<16x128xf32> to vector<2x128xf32>
    %193 = arith.addf %192, %175 : vector<2x128xf32>
    %194 = arith.negf %193 : vector<2x128xf32>
    %195 = math.exp %194 : vector<2x128xf32>
    %cst_53 = arith.constant 1.000000e+00 : f32
    %196 = vector.broadcast %cst_53 : f32 to vector<2x128xf32>
    %197 = arith.addf %196, %195 : vector<2x128xf32>
    %198 = arith.divf %196, %197 : vector<2x128xf32>
    %199 = math.tanh %193 : vector<2x128xf32>
    %200 = vector.extract_strided_slice %198 {offsets = [0, 0], sizes = [2, 32], strides = [1, 1]} : vector<2x128xf32> to vector<2x32xf32>
    %201 = vector.extract_strided_slice %198 {offsets = [0, 32], sizes = [2, 32], strides = [1, 1]} : vector<2x128xf32> to vector<2x32xf32>
    %202 = vector.extract_strided_slice %199 {offsets = [0, 64], sizes = [2, 32], strides = [1, 1]} : vector<2x128xf32> to vector<2x32xf32>
    %203 = vector.extract_strided_slice %198 {offsets = [0, 96], sizes = [2, 32], strides = [1, 1]} : vector<2x128xf32> to vector<2x32xf32>
    %204 = arith.mulf %201, %170 : vector<2x32xf32>
    %205 = arith.mulf %200, %202 : vector<2x32xf32>
    %206 = arith.addf %204, %205 : vector<2x32xf32>
    %207 = math.tanh %206 : vector<2x32xf32>
    %208 = arith.mulf %203, %207 : vector<2x32xf32>
    %c0_54 = arith.constant 0 : index
    %c0_55 = arith.constant 0 : index
    %209 = vector.load %arg4[%c0_54, %c0_55] : memref<32x256xf32, #tpu.memory_space<vmem>>, vector<32x256xf32>
    %cst_56 = arith.constant dense<0.000000e+00> : vector<2x256xf32>
    %210 = tpu.matmul %208, %209, %cst_56 {dimension_numbers = #tpu.dot_dimension_numbers<[1], [0], [0], [1], [0, 0, 1, 1], [], []>} : vector<2x32xf32>, vector<32x256xf32>, vector<2x256xf32> -> vector<2x256xf32>
    %211 = vector.extract_strided_slice %210 {offsets = [0, 0], sizes = [2, 128], strides = [1, 1]} : vector<2x256xf32> to vector<2x128xf32>
    %212 = vector.extract_strided_slice %210 {offsets = [0, 128], sizes = [2, 128], strides = [1, 1]} : vector<2x256xf32> to vector<2x128xf32>
    %213 = vector.broadcast %9 : vector<1x128xf32> to vector<2x128xf32>
    %214 = arith.addf %212, %213 : vector<2x128xf32>
    %cst_57 = arith.constant dense<0xFF800000> : vector<2xf32>
    %215 = vector.multi_reduction <maximumf>, %214, %cst_57 [1] : vector<2x128xf32> to vector<2xf32>
    %216 = vector.shape_cast %215 : vector<2xf32> to vector<2x1xf32>
    %217 = vector.broadcast %216 : vector<2x1xf32> to vector<2x128xf32>
    %218 = arith.subf %214, %217 : vector<2x128xf32>
    %219 = math.exp %218 : vector<2x128xf32>
    %cst_58 = arith.constant dense<0.000000e+00> : vector<2xf32>
    %220 = vector.multi_reduction <add>, %219, %cst_58 [1] : vector<2x128xf32> to vector<2xf32>
    %221 = vector.shape_cast %220 : vector<2xf32> to vector<2x1xf32>
    %222 = math.log %221 : vector<2x1xf32>
    %223 = vector.broadcast %222 : vector<2x1xf32> to vector<2x128xf32>
    %224 = arith.subf %218, %223 : vector<2x128xf32>
    %c5 = arith.constant 5 : index
    %c0_59 = arith.constant 0 : index
    %c0_60 = arith.constant 0 : index
    %225 = vector.load %arg6[%c5, %c0_59, %c0_60] : memref<8x2x128xf32, #tpu.memory_space<vmem>>, vector<1x2x128xf32>
    %226 = vector.shape_cast %225 : vector<1x2x128xf32> to vector<2x128xf32>
    %227 = vector.shape_cast %224 : vector<2x128xf32> to vector<1x2x128xf32>
    tpu.vector_store %arg6[%c5, %c0_59, %c0_60], %227 {strides = array<i32>} : memref<8x2x128xf32, #tpu.memory_space<vmem>>, vector<1x2x128xf32>,
    %228 = vector.extract_strided_slice %8 {offsets = [12, 0], sizes = [2, 128], strides = [1, 1]} : vector<16x128xf32> to vector<2x128xf32>
    %229 = arith.addf %228, %211 : vector<2x128xf32>
    %230 = arith.negf %229 : vector<2x128xf32>
    %231 = math.exp %230 : vector<2x128xf32>
    %cst_61 = arith.constant 1.000000e+00 : f32
    %232 = vector.broadcast %cst_61 : f32 to vector<2x128xf32>
    %233 = arith.addf %232, %231 : vector<2x128xf32>
    %234 = arith.divf %232, %233 : vector<2x128xf32>
    %235 = math.tanh %229 : vector<2x128xf32>
    %236 = vector.extract_strided_slice %234 {offsets = [0, 0], sizes = [2, 32], strides = [1, 1]} : vector<2x128xf32> to vector<2x32xf32>
    %237 = vector.extract_strided_slice %234 {offsets = [0, 32], sizes = [2, 32], strides = [1, 1]} : vector<2x128xf32> to vector<2x32xf32>
    %238 = vector.extract_strided_slice %235 {offsets = [0, 64], sizes = [2, 32], strides = [1, 1]} : vector<2x128xf32> to vector<2x32xf32>
    %239 = vector.extract_strided_slice %234 {offsets = [0, 96], sizes = [2, 32], strides = [1, 1]} : vector<2x128xf32> to vector<2x32xf32>
    %240 = arith.mulf %237, %206 : vector<2x32xf32>
    %241 = arith.mulf %236, %238 : vector<2x32xf32>
    %242 = arith.addf %240, %241 : vector<2x32xf32>
    %243 = math.tanh %242 : vector<2x32xf32>
    %244 = arith.mulf %239, %243 : vector<2x32xf32>
    %c0_62 = arith.constant 0 : index
    %c0_63 = arith.constant 0 : index
    %245 = vector.load %arg4[%c0_62, %c0_63] : memref<32x256xf32, #tpu.memory_space<vmem>>, vector<32x256xf32>
    %cst_64 = arith.constant dense<0.000000e+00> : vector<2x256xf32>
    %246 = tpu.matmul %244, %245, %cst_64 {dimension_numbers = #tpu.dot_dimension_numbers<[1], [0], [0], [1], [0, 0, 1, 1], [], []>} : vector<2x32xf32>, vector<32x256xf32>, vector<2x256xf32> -> vector<2x256xf32>
    %247 = vector.extract_strided_slice %246 {offsets = [0, 0], sizes = [2, 128], strides = [1, 1]} : vector<2x256xf32> to vector<2x128xf32>
    %248 = vector.extract_strided_slice %246 {offsets = [0, 128], sizes = [2, 128], strides = [1, 1]} : vector<2x256xf32> to vector<2x128xf32>
    %249 = vector.broadcast %9 : vector<1x128xf32> to vector<2x128xf32>
    %250 = arith.addf %248, %249 : vector<2x128xf32>
    %cst_65 = arith.constant dense<0xFF800000> : vector<2xf32>
    %251 = vector.multi_reduction <maximumf>, %250, %cst_65 [1] : vector<2x128xf32> to vector<2xf32>
    %252 = vector.shape_cast %251 : vector<2xf32> to vector<2x1xf32>
    %253 = vector.broadcast %252 : vector<2x1xf32> to vector<2x128xf32>
    %254 = arith.subf %250, %253 : vector<2x128xf32>
    %255 = math.exp %254 : vector<2x128xf32>
    %cst_66 = arith.constant dense<0.000000e+00> : vector<2xf32>
    %256 = vector.multi_reduction <add>, %255, %cst_66 [1] : vector<2x128xf32> to vector<2xf32>
    %257 = vector.shape_cast %256 : vector<2xf32> to vector<2x1xf32>
    %258 = math.log %257 : vector<2x1xf32>
    %259 = vector.broadcast %258 : vector<2x1xf32> to vector<2x128xf32>
    %260 = arith.subf %254, %259 : vector<2x128xf32>
    %c6 = arith.constant 6 : index
    %c0_67 = arith.constant 0 : index
    %c0_68 = arith.constant 0 : index
    %261 = vector.load %arg6[%c6, %c0_67, %c0_68] : memref<8x2x128xf32, #tpu.memory_space<vmem>>, vector<1x2x128xf32>
    %262 = vector.shape_cast %261 : vector<1x2x128xf32> to vector<2x128xf32>
    %263 = vector.shape_cast %260 : vector<2x128xf32> to vector<1x2x128xf32>
    tpu.vector_store %arg6[%c6, %c0_67, %c0_68], %263 {strides = array<i32>} : memref<8x2x128xf32, #tpu.memory_space<vmem>>, vector<1x2x128xf32>,
    %264 = vector.extract_strided_slice %8 {offsets = [14, 0], sizes = [2, 128], strides = [1, 1]} : vector<16x128xf32> to vector<2x128xf32>
    %265 = arith.addf %264, %247 : vector<2x128xf32>
    %266 = arith.negf %265 : vector<2x128xf32>
    %267 = math.exp %266 : vector<2x128xf32>
    %cst_69 = arith.constant 1.000000e+00 : f32
    %268 = vector.broadcast %cst_69 : f32 to vector<2x128xf32>
    %269 = arith.addf %268, %267 : vector<2x128xf32>
    %270 = arith.divf %268, %269 : vector<2x128xf32>
    %271 = math.tanh %265 : vector<2x128xf32>
    %272 = vector.extract_strided_slice %270 {offsets = [0, 0], sizes = [2, 32], strides = [1, 1]} : vector<2x128xf32> to vector<2x32xf32>
    %273 = vector.extract_strided_slice %270 {offsets = [0, 32], sizes = [2, 32], strides = [1, 1]} : vector<2x128xf32> to vector<2x32xf32>
    %274 = vector.extract_strided_slice %271 {offsets = [0, 64], sizes = [2, 32], strides = [1, 1]} : vector<2x128xf32> to vector<2x32xf32>
    %275 = vector.extract_strided_slice %270 {offsets = [0, 96], sizes = [2, 32], strides = [1, 1]} : vector<2x128xf32> to vector<2x32xf32>
    %276 = arith.mulf %273, %242 : vector<2x32xf32>
    %277 = arith.mulf %272, %274 : vector<2x32xf32>
    %278 = arith.addf %276, %277 : vector<2x32xf32>
    %279 = math.tanh %278 : vector<2x32xf32>
    %280 = arith.mulf %275, %279 : vector<2x32xf32>
    %c0_70 = arith.constant 0 : index
    %c0_71 = arith.constant 0 : index
    %281 = vector.load %arg4[%c0_70, %c0_71] : memref<32x256xf32, #tpu.memory_space<vmem>>, vector<32x256xf32>
    %cst_72 = arith.constant dense<0.000000e+00> : vector<2x256xf32>
    %282 = tpu.matmul %280, %281, %cst_72 {dimension_numbers = #tpu.dot_dimension_numbers<[1], [0], [0], [1], [0, 0, 1, 1], [], []>} : vector<2x32xf32>, vector<32x256xf32>, vector<2x256xf32> -> vector<2x256xf32>
    %283 = vector.extract_strided_slice %282 {offsets = [0, 0], sizes = [2, 128], strides = [1, 1]} : vector<2x256xf32> to vector<2x128xf32>
    %284 = vector.extract_strided_slice %282 {offsets = [0, 128], sizes = [2, 128], strides = [1, 1]} : vector<2x256xf32> to vector<2x128xf32>
    %285 = vector.broadcast %9 : vector<1x128xf32> to vector<2x128xf32>
    %286 = arith.addf %284, %285 : vector<2x128xf32>
    %cst_73 = arith.constant dense<0xFF800000> : vector<2xf32>
    %287 = vector.multi_reduction <maximumf>, %286, %cst_73 [1] : vector<2x128xf32> to vector<2xf32>
    %288 = vector.shape_cast %287 : vector<2xf32> to vector<2x1xf32>
    %289 = vector.broadcast %288 : vector<2x1xf32> to vector<2x128xf32>
    %290 = arith.subf %286, %289 : vector<2x128xf32>
    %291 = math.exp %290 : vector<2x128xf32>
    %cst_74 = arith.constant dense<0.000000e+00> : vector<2xf32>
    %292 = vector.multi_reduction <add>, %291, %cst_74 [1] : vector<2x128xf32> to vector<2xf32>
    %293 = vector.shape_cast %292 : vector<2xf32> to vector<2x1xf32>
    %294 = math.log %293 : vector<2x1xf32>
    %295 = vector.broadcast %294 : vector<2x1xf32> to vector<2x128xf32>
    %296 = arith.subf %290, %295 : vector<2x128xf32>
    %c7 = arith.constant 7 : index
    %c0_75 = arith.constant 0 : index
    %c0_76 = arith.constant 0 : index
    %297 = vector.load %arg6[%c7, %c0_75, %c0_76] : memref<8x2x128xf32, #tpu.memory_space<vmem>>, vector<1x2x128xf32>
    %298 = vector.shape_cast %297 : vector<1x2x128xf32> to vector<2x128xf32>
    %299 = vector.shape_cast %296 : vector<2x128xf32> to vector<1x2x128xf32>
    tpu.vector_store %arg6[%c7, %c0_75, %c0_76], %299 {strides = array<i32>} : memref<8x2x128xf32, #tpu.memory_space<vmem>>, vector<1x2x128xf32>,
    %c0_77 = arith.constant 0 : index
    %c0_78 = arith.constant 0 : index
    %300 = vector.load %arg7[%c0_77, %c0_78] : memref<2x32xf32, #tpu.memory_space<vmem>>, vector<2x32xf32>
    tpu.vector_store %arg7[%c0_77, %c0_78], %278 {strides = array<i32>} : memref<2x32xf32, #tpu.memory_space<vmem>>, vector<2x32xf32>,
    %c0_79 = arith.constant 0 : index
    %c0_80 = arith.constant 0 : index
    %301 = vector.load %arg8[%c0_79, %c0_80] : memref<2x128xf32, #tpu.memory_space<vmem>>, vector<2x128xf32>
    tpu.vector_store %arg8[%c0_79, %c0_80], %283 {strides = array<i32>} : memref<2x128xf32, #tpu.memory_space<vmem>>, vector<2x128xf32>,
    return
  }
  func.func @transform_0(%arg0: i32) -> (i32, i32) {
    %c0_i32 = arith.constant 0 : i32
    %c0_i32_0 = arith.constant 0 : i32
    return %arg0, %c0_i32 : i32, i32
  }
  func.func @transform_1(%arg0: i32) -> (i32, i32) {
    %c0_i32 = arith.constant 0 : i32
    %c0_i32_0 = arith.constant 0 : i32
    %c0_i32_1 = arith.constant 0 : i32
    return %c0_i32, %c0_i32_0 : i32, i32
  }
  func.func @transform_2(%arg0: i32) -> (i32, i32) {
    %c0_i32 = arith.constant 0 : i32
    %c0_i32_0 = arith.constant 0 : i32
    %c0_i32_1 = arith.constant 0 : i32
    return %c0_i32, %c0_i32_0 : i32, i32
  }
  func.func @transform_3(%arg0: i32) -> (i32, i32) {
    %c0_i32 = arith.constant 0 : i32
    %c0_i32_0 = arith.constant 0 : i32
    %c0_i32_1 = arith.constant 0 : i32
    return %c0_i32, %c0_i32_0 : i32, i32
  }
  func.func @transform_4(%arg0: i32) -> (i32, i32) {
    %c0_i32 = arith.constant 0 : i32
    %c0_i32_0 = arith.constant 0 : i32
    %c0_i32_1 = arith.constant 0 : i32
    return %c0_i32, %c0_i32_0 : i32, i32
  }
  func.func @transform_5(%arg0: i32) -> (i32, i32, i32) {
    %c0_i32 = arith.constant 0 : i32
    %c0_i32_0 = arith.constant 0 : i32
    %c0_i32_1 = arith.constant 0 : i32
    return %arg0, %c0_i32, %c0_i32_0 : i32, i32, i32
  }
}

</mosaic_0001>

<llo_original>
// kernel: tpu_custom_call.1
$region0: #{tpu_custom_call.1}
  #allocation0 [shape = 'u32[]', space=smem, size = 0x4, offset = 0x4, fixed_abs, tag = 'smem constant byte address 0x4 - core index']
  #allocation1 [shape = 'u32[144,128]{1,0:T(1,128)}', space=vmem, size = 0x12000, scoped, tag = 'internal scratch']
  #allocation2 [shape = 'f32[2,32]{1,0:T(2,128)}', space=vmem, size = 0x400, scoped, tag = 'scratch operand']
  #allocation3 [shape = 'f32[2,128]{1,0:T(2,128)}', space=vmem, size = 0x400, scoped, tag = 'scratch operand']
  %s0 = inlined_call_operand.vmem [shape: f32[16,4], index: 0, kind: input, shape index: {}]
  %s1 = inlined_call_operand.vmem [shape: f32[4,128], index: 1, kind: input, shape index: {}]
  %s2 = inlined_call_operand.vmem [shape: f32[1,128], index: 2, kind: input, shape index: {}]
  %s3 = inlined_call_operand.hbm [shape: f32[32,256], index: 3, kind: input, shape index: {}]
  %s4 = inlined_call_operand.vmem [shape: f32[1,128], index: 4, kind: input, shape index: {}]
  %s5 = inlined_call_operand.hbm [shape: f32[8,2,128], index: 5, kind: output, shape index: {}]
  %s6 = sld [smem:[#allocation0]]
  $region38: #{tpu_custom_call.1} parent=0
    _
  %s8 = ssub.s32 1, %s6
  %s9 = scalar_select 0, %s8, %s6
  $region1: #{tpu_custom_call.1} parent=0
    #allocation4 [shape = 'u8[32768]{0}', space=vmem, size = 0x8000, scoped, tag = 'input window, operand 3, single buffered']
    #allocation5 [shape = 's32[1]{0}', space=sflag, size = 0x4, scoped, tag = 'scoped memory for tpu_custom_call.1']
    #allocation6 [shape = 's32[1]{0}', space=sflag, size = 0x4, scoped, tag = 'scoped memory for tpu_custom_call.1']
    #allocation7 [shape = 'u8[8192]{0}', space=vmem, size = 0x2000, scoped, tag = 'output window, operand 0, single buffered']
    %10 = vsyncpa [#allocation5], 0
    %11 = vsyncpa [#allocation6], 0
    // Predicated region
    $region2: #{tpu_custom_call.1} parent=1 // pred_check
      _
    $region3: #{tpu_custom_call.1} parent=1 // pred_check_branch
      %13 = sbr.rel (0) target = $region5
    $region4: #{tpu_custom_call.1} parent=1 // pred_region
      _
    $region5: #{tpu_custom_call.1} parent=1 // pred_fallthru
      _
    // Predicated region
    $region6: #{tpu_custom_call.1} parent=1 // pred_check
      _
    $region7: #{tpu_custom_call.1} parent=1 // pred_check_branch
      %15 = sbr.rel (0) target = $region9
    $region8: #{tpu_custom_call.1} parent=1 // pred_region
      _
    $region9: #{tpu_custom_call.1} parent=1 // pred_fallthru
      _
    // Predicated region
    $region10: #{tpu_custom_call.1} parent=1 // pred_check
      _
    $region11: #{tpu_custom_call.1} parent=1 // pred_check_branch
      %17 = sbr.rel (0) target = $region13
    $region12: #{tpu_custom_call.1} parent=1 // pred_region
      _
    $region13: #{tpu_custom_call.1} parent=1 // pred_fallthru
      _
    // Predicated region
    $region14: #{tpu_custom_call.1} parent=1 // pred_check
      _
    $region15: #{tpu_custom_call.1} parent=1 // pred_check_branch
      %19 = sbr.rel (0) target = $region17
    $region16: #{tpu_custom_call.1} parent=1 // pred_region
      %s21 = ssub.s32 1024, 1024
      %22 = vsyncadd [#allocation5], %s21
      %s23 = sshll.u32 [#allocation4], 4
      %s24 = int_to_ptr.vmem [resolvable:$true] %s23
      %29 = dma.hbm_to_vmem [thread:$0]  %s3, 1024, %s24, [#allocation5], 256, 256, 16
    $region17: #{tpu_custom_call.1} parent=1 // pred_fallthru
      _
    // Predicated region
    $region18: #{tpu_custom_call.1} parent=1 // pred_check
      _
    $region19: #{tpu_custom_call.1} parent=1 // pred_check_branch
      %31 = sbr.rel (0) target = $region21
    $region20: #{tpu_custom_call.1} parent=1 // pred_region
      _
    $region21: #{tpu_custom_call.1} parent=1 // pred_fallthru
      _
    // Predicated region
    $region22: #{tpu_custom_call.1} parent=1 // pred_check
      _
    $region23: #{tpu_custom_call.1} parent=1 // pred_check_branch
      %33 = sbr.rel (0) target = $region25
    $region24: #{tpu_custom_call.1} parent=1 // pred_region
      %34 = dma.done [#allocation5], 1024
    $region25: #{tpu_custom_call.1} parent=1 // pred_fallthru
      _
    %p35 = scmp.eq.s32.totalorder 0, 0
    // Predicated region
    $region26: #{tpu_custom_call.1} parent=1 // pred_check
      %p36 = pneg %p35
    $region27: #{tpu_custom_call.1} parent=1 // pred_check_branch
      %38 = sbr.rel (%p36) target = $region29
    $region28: #{tpu_custom_call.1} parent=1 // pred_region
      %vm39 = vcmask 254976
      %40 = vst.msk [vmem:[#allocation2] sm:$0x3] %vm39, 0.0
      %41 = vst [vmem:[#allocation3] sm:$0x3] 0.0
    $region29: #{tpu_custom_call.1} parent=1 // pred_fallthru
      _
    %v42 = vld [vmem:[%s0] sm:$0xff]
    %v43 = vld [vmem:[%s0 + $0x8] sm:$0xff]
    %v44 = vld [vmem:[%s1] sm:$0xf]
    %v45 = vld [vmem:[%s2] sm:$0x1]
    %v47 = vlaneseq
    %v48 = vshrl.u32 %v47, 7
    %v49 = vsub.s32 0, %v48
    %v50 = vrot.slane %v45, %v49
    %vm52 = vcmask 31744
    %v54 = vsel %vm52, %v42, 0
    %v57 = vsel %vm52, %v43, 0
    %vm59 = vcmask 1043456
    %v61 = vsel %vm59, %v44, 0
    %63 = vmatprep.subr.mxu0 0.0
    %64 = vmatpush1.msra.mxu0 %v61
    %65 = vmatprep.subr.mxu0 0.0
    %66 = vmatpush1.msra.mxu0 0.0
    %67 = vmatprep.subr.mxu0 0.0
    %68 = vmatpush1.msra.mxu0 0.0
    %69 = vmatprep.subr.mxu0 0.0
    %70 = vmatpush1.msra.mxu0 0.0
    %71 = vmatprep.subr.mxu0 0.0
    %72 = vmatpush1.msra.mxu0 0.0
    %73 = vmatprep.subr.mxu0 0.0
    %74 = vmatpush1.msra.mxu0 0.0
    %75 = vmatprep.subr.mxu0 0.0
    %76 = vmatpush1.msra.mxu0 0.0
    %77 = vmatprep.subr.mxu0 0.0
    %78 = vmatpush1.msra.mxu0 0.0
    %79 = vmatprep.subr.mxu0 0.0
    %80 = vmatpush1.msra.mxu0 0.0
    %81 = vmatprep.subr.mxu0 0.0
    %82 = vmatpush1.msra.mxu0 0.0
    %83 = vmatprep.subr.mxu0 0.0
    %84 = vmatpush1.msra.mxu0 0.0
    %85 = vmatprep.subr.mxu0 0.0
    %86 = vmatpush1.msra.mxu0 0.0
    %87 = vmatprep.subr.mxu0 0.0
    %88 = vmatpush1.msra.mxu0 0.0
    %89 = vmatprep.subr.mxu0 0.0
    %90 = vmatpush1.msra.mxu0 0.0
    %91 = vmatprep.subr.mxu0 0.0
    %92 = vmatpush1.msra.mxu0 0.0
    %93 = vmatprep.subr.mxu0 0.0
    %94 = vmatpush1.msra.mxu0 0.0
    %95 = vmatprep.subr.mxu0 0.0
    %96 = vmatpush1.msra.mxu0 0.0
    %97 = vmatprep.subr.mxu0 0.0
    %98 = vmatpush1.msra.mxu0 0.0
    %99 = vmatprep.subr.mxu0 0.0
    %100 = vmatpush1.msra.mxu0 0.0
    %101 = vmatprep.subr.mxu0 0.0
    %102 = vmatpush1.msra.mxu0 0.0
    %103 = vmatprep.subr.mxu0 0.0
    %104 = vmatpush1.msra.mxu0 0.0
    %105 = vmatprep.subr.mxu0 0.0
    %106 = vmatpush1.msra.mxu0 0.0
    %107 = vmatprep.subr.mxu0 0.0
    %108 = vmatpush1.msra.mxu0 0.0
    %109 = vmatprep.subr.mxu0 0.0
    %110 = vmatpush1.msra.mxu0 0.0
    %111 = vmatprep.subr.mxu0 0.0
    %112 = vmatpush1.msra.mxu0 0.0
    %113 = vmatprep.subr.mxu0 0.0
    %114 = vmatpush1.msra.mxu0 0.0
    %115 = vmatprep.subr.mxu0 0.0
    %116 = vmatpush1.msra.mxu0 0.0
    %117 = vmatprep.subr.mxu0 0.0
    %118 = vmatpush1.msra.mxu0 0.0
    %119 = vmatprep.subr.mxu0 0.0
    %120 = vmatpush1.msra.mxu0 0.0
    %121 = vmatprep.subr.mxu0 0.0
    %122 = vmatpush1.msra.mxu0 0.0
    %123 = vmatprep.subr.mxu0 0.0
    %124 = vmatpush1.msra.mxu0 0.0
    %125 = vmatprep.subr.mxu0 0.0
    %126 = vmatpush1.msra.mxu0 0.0
    %127 = vmatprep.mubr.f32.mxu0 0.0
    %128 = vmatmul.mubr.f32.gmra.mrb[0].mxu0 %v54
    %v129 = vpop.f32.mrb[0].mxu0
    %v130 = vadd.f32 %v50, %v129
    %v131 = vpop.f32.mrb[0].mxu0
    %132 = vmatprep.mubr.f32.mxu0 0.0
    %133 = vmatmul.mubr.f32.gmra.mrb[0].mxu0 %v57
    %v134 = vpop.f32.mrb[0].mxu0
    %v135 = vadd.f32 %v50, %v134
    %v136 = vpop.f32.mrb[0].mxu0
    %137 = vdwg.mxu0
    %v138 = vld [vmem:[%s4] sm:$0x1]
    %v139 = vld [vmem:[#allocation2] sm:$0x3]
    %v140 = vld [vmem:[#allocation3] sm:$0x3]
    %v141 = vadd.f32 %v130, %v140
    %v142 = vxor.u32 %v141, 2147483648
    %v143 = vmul.f32 %v142, 1.442695
    %v144 = vpow.pop %v143
    %v145 = vadd.f32 %v144, 1.0
    %v146 = vrcp.pop %v145
    %v147 = vmul.f32 1.0, %v146
    %v148 = vtanh.pop %v141
    %150 = vrot.lane.b32.xlu0 %v139, 32
    %v151 = vpop.permute.xlu0 %150
    %v153 = vmul.f32 %v147, %v151
    %155 = vrot.lane.b32.xlu0 %v148, 64
    %v156 = vpop.permute.xlu0 %155
    %v158 = vmul.f32 %v147, %v156
    %160 = vrot.lane.b32.xlu0 %v158, 32
    %v161 = vpop.permute.xlu0 %160
    %v163 = vadd.f32 %v153, %v161
    %v164 = vtanh.pop %v163
    %166 = vrot.lane.b32.xlu0 %v164, 64
    %v167 = vpop.permute.xlu0 %166
    %v169 = vmul.f32 %v147, %v167
    %v170 = vld [vmem:[#allocation4] sm:$0xff]
    %v171 = vld [vmem:[#allocation4 + $0x8] sm:$0xff]
    %v172 = vld [vmem:[#allocation4 + $0x10] sm:$0xff]
    %v173 = vld [vmem:[#allocation4 + $0x18] sm:$0xff]
    %v174 = vld [vmem:[#allocation4 + $0x20] sm:$0xff]
    %v175 = vld [vmem:[#allocation4 + $0x28] sm:$0xff]
    %v176 = vld [vmem:[#allocation4 + $0x30] sm:$0xff]
    %v177 = vld [vmem:[#allocation4 + $0x38] sm:$0xff]
    %179 = vrot.lane.b32.xlu0 %v169, 32
    %v180 = vpop.permute.xlu0 %179
    %vm181 = vcmask 261120
    %v182 = vsel %vm181, %v180, 0
    %184 = vmatprep.subr.mxu0 %v171
    %185 = vmatpush1.msra.mxu0 %v170
    %186 = vmatprep.subr.mxu0 %v173
    %187 = vmatpush1.msra.mxu0 %v172
    %188 = vmatprep.subr.mxu0 %v175
    %189 = vmatpush1.msra.mxu0 %v174
    %190 = vmatprep.subr.mxu0 %v177
    %191 = vmatpush1.msra.mxu0 %v176
    %192 = vmatprep.subr.mxu0 0.0
    %193 = vmatpush1.msra.mxu0 0.0
    %194 = vmatprep.subr.mxu0 0.0
    %195 = vmatpush1.msra.mxu0 0.0
    %196 = vmatprep.subr.mxu0 0.0
    %197 = vmatpush1.msra.mxu0 0.0
    %198 = vmatprep.subr.mxu0 0.0
    %199 = vmatpush1.msra.mxu0 0.0
    %200 = vmatprep.subr.mxu0 0.0
    %201 = vmatpush1.msra.mxu0 0.0
    %202 = vmatprep.subr.mxu0 0.0
    %203 = vmatpush1.msra.mxu0 0.0
    %204 = vmatprep.subr.mxu0 0.0
    %205 = vmatpush1.msra.mxu0 0.0
    %206 = vmatprep.subr.mxu0 0.0
    %207 = vmatpush1.msra.mxu0 0.0
    %208 = vmatprep.subr.mxu0 0.0
    %209 = vmatpush1.msra.mxu0 0.0
    %210 = vmatprep.subr.mxu0 0.0
    %211 = vmatpush1.msra.mxu0 0.0
    %212 = vmatprep.subr.mxu0 0.0
    %213 = vmatpush1.msra.mxu0 0.0
    %214 = vmatprep.subr.mxu0 0.0
    %215 = vmatpush1.msra.mxu0 0.0
    %216 = vmatprep.subr.mxu0 0.0
    %217 = vmatpush1.msra.mxu0 0.0
    %218 = vmatprep.subr.mxu0 0.0
    %219 = vmatpush1.msra.mxu0 0.0
    %220 = vmatprep.subr.mxu0 0.0
    %221 = vmatpush1.msra.mxu0 0.0
    %222 = vmatprep.subr.mxu0 0.0
    %223 = vmatpush1.msra.mxu0 0.0
    %224 = vmatprep.subr.mxu0 0.0
    %225 = vmatpush1.msra.mxu0 0.0
    %226 = vmatprep.subr.mxu0 0.0
    %227 = vmatpush1.msra.mxu0 0.0
    %228 = vmatprep.subr.mxu0 0.0
    %229 = vmatpush1.msra.mxu0 0.0
    %230 = vmatprep.subr.mxu0 0.0
    %231 = vmatpush1.msra.mxu0 0.0
    %232 = vmatprep.subr.mxu0 0.0
    %233 = vmatpush1.msra.mxu0 0.0
    %234 = vmatprep.subr.mxu0 0.0
    %235 = vmatpush1.msra.mxu0 0.0
    %236 = vmatprep.subr.mxu0 0.0
    %237 = vmatpush1.msra.mxu0 0.0
    %238 = vmatprep.subr.mxu0 0.0
    %239 = vmatpush1.msra.mxu0 0.0
    %240 = vmatprep.subr.mxu0 0.0
    %241 = vmatpush1.msra.mxu0 0.0
    %242 = vmatprep.subr.mxu0 0.0
    %243 = vmatpush1.msra.mxu0 0.0
    %244 = vmatprep.subr.mxu0 0.0
    %245 = vmatpush1.msra.mxu0 0.0
    %246 = vmatprep.subr.mxu0 0.0
    %247 = vmatpush1.msra.mxu0 0.0
    %248 = vmatprep.mubr.f32.mxu0 0.0
    %249 = vmatmul.mubr.f32.gmra.mrb[0].mxu0 %v182
    %v250 = vpop.f32.mrb[0].mxu0
    %v251 = vadd.f32 0.0, %v250
    %v252 = vpop.f32.mrb[0].mxu0
    %v253 = vadd.f32 0.0, %v252
    %254 = vdwg.mxu0
    %v256 = vlaneseq
    %v257 = vshrl.u32 %v256, 7
    %v258 = vsub.s32 0, %v257
    %v259 = vrot.slane %v138, %v258
    %v261 = vadd.f32 %v253, %v259
    %vm262 = vcmask 1041408
    %v263 = vsel %vm262, %v261, -inf
    %264 = vmax.xlane.f32.xlu0 %v263
    %v265 = vpop.xlane.xlu0 %264
    %v266 = vsub.f32 %v261, %v265
    %v267 = vmul.f32 %v266, 1.442695
    %v268 = vpow.pop %v267
    %v269 = vsel %vm262, %v268, 0.0
    %270 = vadd.xlane.f32.xlu0 %v269
    %v271 = vpop.xlane.xlu0 %270
    %v272 = vlog2.pop %v271
    %v273 = vmul.f32 %v272, 0.6931472
    %v274 = vsub.f32 %v266, %v273
    %275 = vst [vmem:[#allocation7] sm:$0x3] %v274
    %v277 = vrot.slane %v251, 6
    %v279 = vadd.f32 %v130, %v277
    %v280 = vxor.u32 %v279, 2147483648
    %v281 = vmul.f32 %v280, 1.442695
    %v282 = vpow.pop %v281
    %v283 = vadd.f32 %v282, 1.0
    %v284 = vrcp.pop %v283
    %v285 = vmul.f32 1.0, %v284
    %v286 = vtanh.pop %v279
    %v288 = vrot.slane %v163, 6
    %v290 = vmul.f32 %v285, %v288
    %292 = vrot.lane.b32.xlu0 %v286, 64
    %v293 = vpop.permute.xlu0 %292
    %v295 = vmul.f32 %v285, %v293
    %297 = vrot.lane.b32.xlu0 %v295, 32
    %v298 = vpop.permute.xlu0 %297
    %v300 = vadd.f32 %v290, %v298
    %v301 = vtanh.pop %v300
    %303 = vrot.lane.b32.xlu0 %v301, 64
    %v304 = vpop.permute.xlu0 %303
    %v306 = vmul.f32 %v285, %v304
    %v307 = vld [vmem:[#allocation4] sm:$0xff]
    %v308 = vld [vmem:[#allocation4 + $0x8] sm:$0xff]
    %v309 = vld [vmem:[#allocation4 + $0x10] sm:$0xff]
    %v310 = vld [vmem:[#allocation4 + $0x18] sm:$0xff]
    %v311 = vld [vmem:[#allocation4 + $0x20] sm:$0xff]
    %v312 = vld [vmem:[#allocation4 + $0x28] sm:$0xff]
    %v313 = vld [vmem:[#allocation4 + $0x30] sm:$0xff]
    %v314 = vld [vmem:[#allocation4 + $0x38] sm:$0xff]
    %v316 = vrot.slane %v306, 2
    %317 = vrot.lane.b32.xlu0 %v316, 32
    %v318 = vpop.permute.xlu0 %317
    %v319 = vsel %vm181, %v318, 0
    %321 = vmatprep.subr.mxu0 %v308
    %322 = vmatpush1.msra.mxu0 %v307
    %323 = vmatprep.subr.mxu0 %v310
    %324 = vmatpush1.msra.mxu0 %v309
    %325 = vmatprep.subr.mxu0 %v312
    %326 = vmatpush1.msra.mxu0 %v311
    %327 = vmatprep.subr.mxu0 %v314
    %328 = vmatpush1.msra.mxu0 %v313
    %329 = vmatprep.subr.mxu0 0.0
    %330 = vmatpush1.msra.mxu0 0.0
    %331 = vmatprep.subr.mxu0 0.0
    %332 = vmatpush1.msra.mxu0 0.0
    %333 = vmatprep.subr.mxu0 0.0
    %334 = vmatpush1.msra.mxu0 0.0
    %335 = vmatprep.subr.mxu0 0.0
    %336 = vmatpush1.msra.mxu0 0.0
    %337 = vmatprep.subr.mxu0 0.0
    %338 = vmatpush1.msra.mxu0 0.0
    %339 = vmatprep.subr.mxu0 0.0
    %340 = vmatpush1.msra.mxu0 0.0
    %341 = vmatprep.subr.mxu0 0.0
    %342 = vmatpush1.msra.mxu0 0.0
    %343 = vmatprep.subr.mxu0 0.0
    %344 = vmatpush1.msra.mxu0 0.0
    %345 = vmatprep.subr.mxu0 0.0
    %346 = vmatpush1.msra.mxu0 0.0
    %347 = vmatprep.subr.mxu0 0.0
    %348 = vmatpush1.msra.mxu0 0.0
    %349 = vmatprep.subr.mxu0 0.0
    %350 = vmatpush1.msra.mxu0 0.0
    %351 = vmatprep.subr.mxu0 0.0
    %352 = vmatpush1.msra.mxu0 0.0
    %353 = vmatprep.subr.mxu0 0.0
    %354 = vmatpush1.msra.mxu0 0.0
    %355 = vmatprep.subr.mxu0 0.0
    %356 = vmatpush1.msra.mxu0 0.0
    %357 = vmatprep.subr.mxu0 0.0
    %358 = vmatpush1.msra.mxu0 0.0
    %359 = vmatprep.subr.mxu0 0.0
    %360 = vmatpush1.msra.mxu0 0.0
    %361 = vmatprep.subr.mxu0 0.0
    %362 = vmatpush1.msra.mxu0 0.0
    %363 = vmatprep.subr.mxu0 0.0
    %364 = vmatpush1.msra.mxu0 0.0
    %365 = vmatprep.subr.mxu0 0.0
    %366 = vmatpush1.msra.mxu0 0.0
    %367 = vmatprep.subr.mxu0 0.0
    %368 = vmatpush1.msra.mxu0 0.0
    %369 = vmatprep.subr.mxu0 0.0
    %370 = vmatpush1.msra.mxu0 0.0
    %371 = vmatprep.subr.mxu0 0.0
    %372 = vmatpush1.msra.mxu0 0.0
    %373 = vmatprep.subr.mxu0 0.0
    %374 = vmatpush1.msra.mxu0 0.0
    %375 = vmatprep.subr.mxu0 0.0
    %376 = vmatpush1.msra.mxu0 0.0
    %377 = vmatprep.subr.mxu0 0.0
    %378 = vmatpush1.msra.mxu0 0.0
    %379 = vmatprep.subr.mxu0 0.0
    %380 = vmatpush1.msra.mxu0 0.0
    %381 = vmatprep.subr.mxu0 0.0
    %382 = vmatpush1.msra.mxu0 0.0
    %383 = vmatprep.subr.mxu0 0.0
    %384 = vmatpush1.msra.mxu0 0.0
    %385 = vmatprep.mubr.f32.mxu0 0.0
    %386 = vmatmul.mubr.f32.gmra.mrb[0].mxu0 %v319
    %v387 = vpop.f32.mrb[0].mxu0
    %v388 = vadd.f32 0.0, %v387
    %v389 = vpop.f32.mrb[0].mxu0
    %v390 = vadd.f32 0.0, %v389
    %391 = vdwg.mxu0
    %v392 = vadd.f32 %v390, %v259
    %v393 = vsel %vm262, %v392, -inf
    %394 = vmax.xlane.f32.xlu0 %v393
    %v395 = vpop.xlane.xlu0 %394
    %v396 = vsub.f32 %v392, %v395
    %v397 = vmul.f32 %v396, 1.442695
    %v398 = vpow.pop %v397
    %v399 = vsel %vm262, %v398, 0.0
    %400 = vadd.xlane.f32.xlu0 %v399
    %v401 = vpop.xlane.xlu0 %400
    %v402 = vlog2.pop %v401
    %v403 = vmul.f32 %v402, 0.6931472
    %v404 = vsub.f32 %v396, %v403
    %s405 = scalar_lea.vmem [#allocation7], 2
    %406 = vst [vmem:[%s405] sm:$0x3] %v404
    %v408 = vrot.slane %v388, 4
    %v410 = vadd.f32 %v130, %v408
    %v411 = vxor.u32 %v410, 2147483648
    %v412 = vmul.f32 %v411, 1.442695
    %v413 = vpow.pop %v412
    %v414 = vadd.f32 %v413, 1.0
    %v415 = vrcp.pop %v414
    %v416 = vmul.f32 1.0, %v415
    %v417 = vtanh.pop %v410
    %v419 = vrot.slane %v300, 6
    %v421 = vmul.f32 %v416, %v419
    %423 = vrot.lane.b32.xlu0 %v417, 64
    %v424 = vpop.permute.xlu0 %423
    %v426 = vmul.f32 %v416, %v424
    %428 = vrot.lane.b32.xlu0 %v426, 32
    %v429 = vpop.permute.xlu0 %428
    %v431 = vadd.f32 %v421, %v429
    %v432 = vtanh.pop %v431
    %434 = vrot.lane.b32.xlu0 %v432, 64
    %v435 = vpop.permute.xlu0 %434
    %v437 = vmul.f32 %v416, %v435
    %v438 = vld [vmem:[#allocation4] sm:$0xff]
    %v439 = vld [vmem:[#allocation4 + $0x8] sm:$0xff]
    %v440 = vld [vmem:[#allocation4 + $0x10] sm:$0xff]
    %v441 = vld [vmem:[#allocation4 + $0x18] sm:$0xff]
    %v442 = vld [vmem:[#allocation4 + $0x20] sm:$0xff]
    %v443 = vld [vmem:[#allocation4 + $0x28] sm:$0xff]
    %v444 = vld [vmem:[#allocation4 + $0x30] sm:$0xff]
    %v445 = vld [vmem:[#allocation4 + $0x38] sm:$0xff]
    %v447 = vrot.slane %v437, 4
    %448 = vrot.lane.b32.xlu0 %v447, 32
    %v449 = vpop.permute.xlu0 %448
    %v450 = vsel %vm181, %v449, 0
    %452 = vmatprep.subr.mxu0 %v439
    %453 = vmatpush1.msra.mxu0 %v438
    %454 = vmatprep.subr.mxu0 %v441
    %455 = vmatpush1.msra.mxu0 %v440
    %456 = vmatprep.subr.mxu0 %v443
    %457 = vmatpush1.msra.mxu0 %v442
    %458 = vmatprep.subr.mxu0 %v445
    %459 = vmatpush1.msra.mxu0 %v444
    %460 = vmatprep.subr.mxu0 0.0
    %461 = vmatpush1.msra.mxu0 0.0
    %462 = vmatprep.subr.mxu0 0.0
    %463 = vmatpush1.msra.mxu0 0.0
    %464 = vmatprep.subr.mxu0 0.0
    %465 = vmatpush1.msra.mxu0 0.0
    %466 = vmatprep.subr.mxu0 0.0
    %467 = vmatpush1.msra.mxu0 0.0
    %468 = vmatprep.subr.mxu0 0.0
    %469 = vmatpush1.msra.mxu0 0.0
    %470 = vmatprep.subr.mxu0 0.0
    %471 = vmatpush1.msra.mxu0 0.0
    %472 = vmatprep.subr.mxu0 0.0
    %473 = vmatpush1.msra.mxu0 0.0
    %474 = vmatprep.subr.mxu0 0.0
    %475 = vmatpush1.msra.mxu0 0.0
    %476 = vmatprep.subr.mxu0 0.0
    %477 = vmatpush1.msra.mxu0 0.0
    %478 = vmatprep.subr.mxu0 0.0
    %479 = vmatpush1.msra.mxu0 0.0
    %480 = vmatprep.subr.mxu0 0.0
    %481 = vmatpush1.msra.mxu0 0.0
    %482 = vmatprep.subr.mxu0 0.0
    %483 = vmatpush1.msra.mxu0 0.0
    %484 = vmatprep.subr.mxu0 0.0
    %485 = vmatpush1.msra.mxu0 0.0
    %486 = vmatprep.subr.mxu0 0.0
    %487 = vmatpush1.msra.mxu0 0.0
    %488 = vmatprep.subr.mxu0 0.0
    %489 = vmatpush1.msra.mxu0 0.0
    %490 = vmatprep.subr.mxu0 0.0
    %491 = vmatpush1.msra.mxu0 0.0
    %492 = vmatprep.subr.mxu0 0.0
    %493 = vmatpush1.msra.mxu0 0.0
    %494 = vmatprep.subr.mxu0 0.0
    %495 = vmatpush1.msra.mxu0 0.0
    %496 = vmatprep.subr.mxu0 0.0
    %497 = vmatpush1.msra.mxu0 0.0
    %498 = vmatprep.subr.mxu0 0.0
    %499 = vmatpush1.msra.mxu0 0.0
    %500 = vmatprep.subr.mxu0 0.0
    %501 = vmatpush1.msra.mxu0 0.0
    %502 = vmatprep.subr.mxu0 0.0
    %503 = vmatpush1.msra.mxu0 0.0
    %504 = vmatprep.subr.mxu0 0.0
    %505 = vmatpush1.msra.mxu0 0.0
    %506 = vmatprep.subr.mxu0 0.0
    %507 = vmatpush1.msra.mxu0 0.0
    %508 = vmatprep.subr.mxu0 0.0
    %509 = vmatpush1.msra.mxu0 0.0
    %510 = vmatprep.subr.mxu0 0.0
    %511 = vmatpush1.msra.mxu0 0.0
    %512 = vmatprep.subr.mxu0 0.0
    %513 = vmatpush1.msra.mxu0 0.0
    %514 = vmatprep.subr.mxu0 0.0
    %515 = vmatpush1.msra.mxu0 0.0
    %516 = vmatprep.mubr.f32.mxu0 0.0
    %517 = vmatmul.mubr.f32.gmra.mrb[0].mxu0 %v450
    %v518 = vpop.f32.mrb[0].mxu0
    %v519 = vadd.f32 0.0, %v518
    %v520 = vpop.f32.mrb[0].mxu0
    %v521 = vadd.f32 0.0, %v520
    %522 = vdwg.mxu0
    %v523 = vadd.f32 %v521, %v259
    %v524 = vsel %vm262, %v523, -inf
    %525 = vmax.xlane.f32.xlu0 %v524
    %v526 = vpop.xlane.xlu0 %525
    %v527 = vsub.f32 %v523, %v526
    %v528 = vmul.f32 %v527, 1.442695
    %v529 = vpow.pop %v528
    %v530 = vsel %vm262, %v529, 0.0
    %531 = vadd.xlane.f32.xlu0 %v530
    %v532 = vpop.xlane.xlu0 %531
    %v533 = vlog2.pop %v532
    %v534 = vmul.f32 %v533, 0.6931472
    %v535 = vsub.f32 %v527, %v534
    %s536 = scalar_lea.vmem [#allocation7], 4
    %537 = vst [vmem:[%s536] sm:$0x3] %v535
    %v539 = vrot.slane %v519, 2
    %v541 = vadd.f32 %v130, %v539
    %v542 = vxor.u32 %v541, 2147483648
    %v543 = vmul.f32 %v542, 1.442695
    %v544 = vpow.pop %v543
    %v545 = vadd.f32 %v544, 1.0
    %v546 = vrcp.pop %v545
    %v547 = vmul.f32 1.0, %v546
    %v548 = vtanh.pop %v541
    %v550 = vrot.slane %v431, 6
    %v552 = vmul.f32 %v547, %v550
    %554 = vrot.lane.b32.xlu0 %v548, 64
    %v555 = vpop.permute.xlu0 %554
    %v557 = vmul.f32 %v547, %v555
    %559 = vrot.lane.b32.xlu0 %v557, 32
    %v560 = vpop.permute.xlu0 %559
    %v562 = vadd.f32 %v552, %v560
    %v563 = vtanh.pop %v562
    %565 = vrot.lane.b32.xlu0 %v563, 64
    %v566 = vpop.permute.xlu0 %565
    %v568 = vmul.f32 %v547, %v566
    %v569 = vld [vmem:[#allocation4] sm:$0xff]
    %v570 = vld [vmem:[#allocation4 + $0x8] sm:$0xff]
    %v571 = vld [vmem:[#allocation4 + $0x10] sm:$0xff]
    %v572 = vld [vmem:[#allocation4 + $0x18] sm:$0xff]
    %v573 = vld [vmem:[#allocation4 + $0x20] sm:$0xff]
    %v574 = vld [vmem:[#allocation4 + $0x28] sm:$0xff]
    %v575 = vld [vmem:[#allocation4 + $0x30] sm:$0xff]
    %v576 = vld [vmem:[#allocation4 + $0x38] sm:$0xff]
    %v578 = vrot.slane %v568, 6
    %579 = vrot.lane.b32.xlu0 %v578, 32
    %v580 = vpop.permute.xlu0 %579
    %v581 = vsel %vm181, %v580, 0
    %583 = vmatprep.subr.mxu0 %v570
    %584 = vmatpush1.msra.mxu0 %v569
    %585 = vmatprep.subr.mxu0 %v572
    %586 = vmatpush1.msra.mxu0 %v571
    %587 = vmatprep.subr.mxu0 %v574
    %588 = vmatpush1.msra.mxu0 %v573
    %589 = vmatprep.subr.mxu0 %v576
    %590 = vmatpush1.msra.mxu0 %v575
    %591 = vmatprep.subr.mxu0 0.0
    %592 = vmatpush1.msra.mxu0 0.0
    %593 = vmatprep.subr.mxu0 0.0
    %594 = vmatpush1.msra.mxu0 0.0
    %595 = vmatprep.subr.mxu0 0.0
    %596 = vmatpush1.msra.mxu0 0.0
    %597 = vmatprep.subr.mxu0 0.0
    %598 = vmatpush1.msra.mxu0 0.0
    %599 = vmatprep.subr.mxu0 0.0
    %600 = vmatpush1.msra.mxu0 0.0
    %601 = vmatprep.subr.mxu0 0.0
    %602 = vmatpush1.msra.mxu0 0.0
    %603 = vmatprep.subr.mxu0 0.0
    %604 = vmatpush1.msra.mxu0 0.0
    %605 = vmatprep.subr.mxu0 0.0
    %606 = vmatpush1.msra.mxu0 0.0
    %607 = vmatprep.subr.mxu0 0.0
    %608 = vmatpush1.msra.mxu0 0.0
    %609 = vmatprep.subr.mxu0 0.0
    %610 = vmatpush1.msra.mxu0 0.0
    %611 = vmatprep.subr.mxu0 0.0
    %612 = vmatpush1.msra.mxu0 0.0
    %613 = vmatprep.subr.mxu0 0.0
    %614 = vmatpush1.msra.mxu0 0.0
    %615 = vmatprep.subr.mxu0 0.0
    %616 = vmatpush1.msra.mxu0 0.0
    %617 = vmatprep.subr.mxu0 0.0
    %618 = vmatpush1.msra.mxu0 0.0
    %619 = vmatprep.subr.mxu0 0.0
    %620 = vmatpush1.msra.mxu0 0.0
    %621 = vmatprep.subr.mxu0 0.0
    %622 = vmatpush1.msra.mxu0 0.0
    %623 = vmatprep.subr.mxu0 0.0
    %624 = vmatpush1.msra.mxu0 0.0
    %625 = vmatprep.subr.mxu0 0.0
    %626 = vmatpush1.msra.mxu0 0.0
    %627 = vmatprep.subr.mxu0 0.0
    %628 = vmatpush1.msra.mxu0 0.0
    %629 = vmatprep.subr.mxu0 0.0
    %630 = vmatpush1.msra.mxu0 0.0
    %631 = vmatprep.subr.mxu0 0.0
    %632 = vmatpush1.msra.mxu0 0.0
    %633 = vmatprep.subr.mxu0 0.0
    %634 = vmatpush1.msra.mxu0 0.0
    %635 = vmatprep.subr.mxu0 0.0
    %636 = vmatpush1.msra.mxu0 0.0
    %637 = vmatprep.subr.mxu0 0.0
    %638 = vmatpush1.msra.mxu0 0.0
    %639 = vmatprep.subr.mxu0 0.0
    %640 = vmatpush1.msra.mxu0 0.0
    %641 = vmatprep.subr.mxu0 0.0
    %642 = vmatpush1.msra.mxu0 0.0
    %643 = vmatprep.subr.mxu0 0.0
    %644 = vmatpush1.msra.mxu0 0.0
    %645 = vmatprep.subr.mxu0 0.0
    %646 = vmatpush1.msra.mxu0 0.0
    %647 = vmatprep.mubr.f32.mxu0 0.0
    %648 = vmatmul.mubr.f32.gmra.mrb[0].mxu0 %v581
    %v649 = vpop.f32.mrb[0].mxu0
    %v650 = vadd.f32 0.0, %v649
    %v651 = vpop.f32.mrb[0].mxu0
    %v652 = vadd.f32 0.0, %v651
    %653 = vdwg.mxu0
    %v654 = vadd.f32 %v652, %v259
    %v655 = vsel %vm262, %v654, -inf
    %656 = vmax.xlane.f32.xlu0 %v655
    %v657 = vpop.xlane.xlu0 %656
    %v658 = vsub.f32 %v654, %v657
    %v659 = vmul.f32 %v658, 1.442695
    %v660 = vpow.pop %v659
    %v661 = vsel %vm262, %v660, 0.0
    %662 = vadd.xlane.f32.xlu0 %v661
    %v663 = vpop.xlane.xlu0 %662
    %v664 = vlog2.pop %v663
    %v665 = vmul.f32 %v664, 0.6931472
    %v666 = vsub.f32 %v658, %v665
    %s667 = scalar_lea.vmem [#allocation7], 6
    %668 = vst [vmem:[%s667] sm:$0x3] %v666
    %v669 = vadd.f32 %v135, %v650
    %v670 = vxor.u32 %v669, 2147483648
    %v671 = vmul.f32 %v670, 1.442695
    %v672 = vpow.pop %v671
    %v673 = vadd.f32 %v672, 1.0
    %v674 = vrcp.pop %v673
    %v675 = vmul.f32 1.0, %v674
    %v676 = vtanh.pop %v669
    %v678 = vrot.slane %v562, 6
    %v680 = vmul.f32 %v675, %v678
    %682 = vrot.lane.b32.xlu0 %v676, 64
    %v683 = vpop.permute.xlu0 %682
    %v685 = vmul.f32 %v675, %v683
    %687 = vrot.lane.b32.xlu0 %v685, 32
    %v688 = vpop.permute.xlu0 %687
    %v690 = vadd.f32 %v680, %v688
    %v691 = vtanh.pop %v690
    %693 = vrot.lane.b32.xlu0 %v691, 64
    %v694 = vpop.permute.xlu0 %693
    %v696 = vmul.f32 %v675, %v694
    %v697 = vld [vmem:[#allocation4] sm:$0xff]
    %v698 = vld [vmem:[#allocation4 + $0x8] sm:$0xff]
    %v699 = vld [vmem:[#allocation4 + $0x10] sm:$0xff]
    %v700 = vld [vmem:[#allocation4 + $0x18] sm:$0xff]
    %v701 = vld [vmem:[#allocation4 + $0x20] sm:$0xff]
    %v702 = vld [vmem:[#allocation4 + $0x28] sm:$0xff]
    %v703 = vld [vmem:[#allocation4 + $0x30] sm:$0xff]
    %v704 = vld [vmem:[#allocation4 + $0x38] sm:$0xff]
    %706 = vrot.lane.b32.xlu0 %v696, 32
    %v707 = vpop.permute.xlu0 %706
    %v708 = vsel %vm181, %v707, 0
    %710 = vmatprep.subr.mxu0 %v698
    %711 = vmatpush1.msra.mxu0 %v697
    %712 = vmatprep.subr.mxu0 %v700
    %713 = vmatpush1.msra.mxu0 %v699
    %714 = vmatprep.subr.mxu0 %v702
    %715 = vmatpush1.msra.mxu0 %v701
    %716 = vmatprep.subr.mxu0 %v704
    %717 = vmatpush1.msra.mxu0 %v703
    %718 = vmatprep.subr.mxu0 0.0
    %719 = vmatpush1.msra.mxu0 0.0
    %720 = vmatprep.subr.mxu0 0.0
    %721 = vmatpush1.msra.mxu0 0.0
    %722 = vmatprep.subr.mxu0 0.0
    %723 = vmatpush1.msra.mxu0 0.0
    %724 = vmatprep.subr.mxu0 0.0
    %725 = vmatpush1.msra.mxu0 0.0
    %726 = vmatprep.subr.mxu0 0.0
    %727 = vmatpush1.msra.mxu0 0.0
    %728 = vmatprep.subr.mxu0 0.0
    %729 = vmatpush1.msra.mxu0 0.0
    %730 = vmatprep.subr.mxu0 0.0
    %731 = vmatpush1.msra.mxu0 0.0
    %732 = vmatprep.subr.mxu0 0.0
    %733 = vmatpush1.msra.mxu0 0.0
    %734 = vmatprep.subr.mxu0 0.0
    %735 = vmatpush1.msra.mxu0 0.0
    %736 = vmatprep.subr.mxu0 0.0
    %737 = vmatpush1.msra.mxu0 0.0
    %738 = vmatprep.subr.mxu0 0.0
    %739 = vmatpush1.msra.mxu0 0.0
    %740 = vmatprep.subr.mxu0 0.0
    %741 = vmatpush1.msra.mxu0 0.0
    %742 = vmatprep.subr.mxu0 0.0
    %743 = vmatpush1.msra.mxu0 0.0
    %744 = vmatprep.subr.mxu0 0.0
    %745 = vmatpush1.msra.mxu0 0.0
    %746 = vmatprep.subr.mxu0 0.0
    %747 = vmatpush1.msra.mxu0 0.0
    %748 = vmatprep.subr.mxu0 0.0
    %749 = vmatpush1.msra.mxu0 0.0
    %750 = vmatprep.subr.mxu0 0.0
    %751 = vmatpush1.msra.mxu0 0.0
    %752 = vmatprep.subr.mxu0 0.0
    %753 = vmatpush1.msra.mxu0 0.0
    %754 = vmatprep.subr.mxu0 0.0
    %755 = vmatpush1.msra.mxu0 0.0
    %756 = vmatprep.subr.mxu0 0.0
    %757 = vmatpush1.msra.mxu0 0.0
    %758 = vmatprep.subr.mxu0 0.0
    %759 = vmatpush1.msra.mxu0 0.0
    %760 = vmatprep.subr.mxu0 0.0
    %761 = vmatpush1.msra.mxu0 0.0
    %762 = vmatprep.subr.mxu0 0.0
    %763 = vmatpush1.msra.mxu0 0.0
    %764 = vmatprep.subr.mxu0 0.0
    %765 = vmatpush1.msra.mxu0 0.0
    %766 = vmatprep.subr.mxu0 0.0
    %767 = vmatpush1.msra.mxu0 0.0
    %768 = vmatprep.subr.mxu0 0.0
    %769 = vmatpush1.msra.mxu0 0.0
    %770 = vmatprep.subr.mxu0 0.0
    %771 = vmatpush1.msra.mxu0 0.0
    %772 = vmatprep.subr.mxu0 0.0
    %773 = vmatpush1.msra.mxu0 0.0
    %774 = vmatprep.mubr.f32.mxu0 0.0
    %775 = vmatmul.mubr.f32.gmra.mrb[0].mxu0 %v708
    %v776 = vpop.f32.mrb[0].mxu0
    %v777 = vadd.f32 0.0, %v776
    %v778 = vpop.f32.mrb[0].mxu0
    %v779 = vadd.f32 0.0, %v778
    %780 = vdwg.mxu0
    %v781 = vadd.f32 %v779, %v259
    %v782 = vsel %vm262, %v781, -inf
    %783 = vmax.xlane.f32.xlu0 %v782
    %v784 = vpop.xlane.xlu0 %783
    %v785 = vsub.f32 %v781, %v784
    %v786 = vmul.f32 %v785, 1.442695
    %v787 = vpow.pop %v786
    %v788 = vsel %vm262, %v787, 0.0
    %789 = vadd.xlane.f32.xlu0 %v788
    %v790 = vpop.xlane.xlu0 %789
    %v791 = vlog2.pop %v790
    %v792 = vmul.f32 %v791, 0.6931472
    %v793 = vsub.f32 %v785, %v792
    %s794 = scalar_lea.vmem [#allocation7], 8
    %795 = vst [vmem:[%s794] sm:$0x3] %v793
    %v797 = vrot.slane %v777, 6
    %v799 = vadd.f32 %v135, %v797
    %v800 = vxor.u32 %v799, 2147483648
    %v801 = vmul.f32 %v800, 1.442695
    %v802 = vpow.pop %v801
    %v803 = vadd.f32 %v802, 1.0
    %v804 = vrcp.pop %v803
    %v805 = vmul.f32 1.0, %v804
    %v806 = vtanh.pop %v799
    %v808 = vrot.slane %v690, 6
    %v810 = vmul.f32 %v805, %v808
    %812 = vrot.lane.b32.xlu0 %v806, 64
    %v813 = vpop.permute.xlu0 %812
    %v815 = vmul.f32 %v805, %v813
    %817 = vrot.lane.b32.xlu0 %v815, 32
    %v818 = vpop.permute.xlu0 %817
    %v820 = vadd.f32 %v810, %v818
    %v821 = vtanh.pop %v820
    %823 = vrot.lane.b32.xlu0 %v821, 64
    %v824 = vpop.permute.xlu0 %823
    %v826 = vmul.f32 %v805, %v824
    %v827 = vld [vmem:[#allocation4] sm:$0xff]
    %v828 = vld [vmem:[#allocation4 + $0x8] sm:$0xff]
    %v829 = vld [vmem:[#allocation4 + $0x10] sm:$0xff]
    %v830 = vld [vmem:[#allocation4 + $0x18] sm:$0xff]
    %v831 = vld [vmem:[#allocation4 + $0x20] sm:$0xff]
    %v832 = vld [vmem:[#allocation4 + $0x28] sm:$0xff]
    %v833 = vld [vmem:[#allocation4 + $0x30] sm:$0xff]
    %v834 = vld [vmem:[#allocation4 + $0x38] sm:$0xff]
    %v836 = vrot.slane %v826, 2
    %837 = vrot.lane.b32.xlu0 %v836, 32
    %v838 = vpop.permute.xlu0 %837
    %v839 = vsel %vm181, %v838, 0
    %841 = vmatprep.subr.mxu0 %v828
    %842 = vmatpush1.msra.mxu0 %v827
    %843 = vmatprep.subr.mxu0 %v830
    %844 = vmatpush1.msra.mxu0 %v829
    %845 = vmatprep.subr.mxu0 %v832
    %846 = vmatpush1.msra.mxu0 %v831
    %847 = vmatprep.subr.mxu0 %v834
    %848 = vmatpush1.msra.mxu0 %v833
    %849 = vmatprep.subr.mxu0 0.0
    %850 = vmatpush1.msra.mxu0 0.0
    %851 = vmatprep.subr.mxu0 0.0
    %852 = vmatpush1.msra.mxu0 0.0
    %853 = vmatprep.subr.mxu0 0.0
    %854 = vmatpush1.msra.mxu0 0.0
    %855 = vmatprep.subr.mxu0 0.0
    %856 = vmatpush1.msra.mxu0 0.0
    %857 = vmatprep.subr.mxu0 0.0
    %858 = vmatpush1.msra.mxu0 0.0
    %859 = vmatprep.subr.mxu0 0.0
    %860 = vmatpush1.msra.mxu0 0.0
    %861 = vmatprep.subr.mxu0 0.0
    %862 = vmatpush1.msra.mxu0 0.0
    %863 = vmatprep.subr.mxu0 0.0
    %864 = vmatpush1.msra.mxu0 0.0
    %865 = vmatprep.subr.mxu0 0.0
    %866 = vmatpush1.msra.mxu0 0.0
    %867 = vmatprep.subr.mxu0 0.0
    %868 = vmatpush1.msra.mxu0 0.0
    %869 = vmatprep.subr.mxu0 0.0
    %870 = vmatpush1.msra.mxu0 0.0
    %871 = vmatprep.subr.mxu0 0.0
    %872 = vmatpush1.msra.mxu0 0.0
    %873 = vmatprep.subr.mxu0 0.0
    %874 = vmatpush1.msra.mxu0 0.0
    %875 = vmatprep.subr.mxu0 0.0
    %876 = vmatpush1.msra.mxu0 0.0
    %877 = vmatprep.subr.mxu0 0.0
    %878 = vmatpush1.msra.mxu0 0.0
    %879 = vmatprep.subr.mxu0 0.0
    %880 = vmatpush1.msra.mxu0 0.0
    %881 = vmatprep.subr.mxu0 0.0
    %882 = vmatpush1.msra.mxu0 0.0
    %883 = vmatprep.subr.mxu0 0.0
    %884 = vmatpush1.msra.mxu0 0.0
    %885 = vmatprep.subr.mxu0 0.0
    %886 = vmatpush1.msra.mxu0 0.0
    %887 = vmatprep.subr.mxu0 0.0
    %888 = vmatpush1.msra.mxu0 0.0
    %889 = vmatprep.subr.mxu0 0.0
    %890 = vmatpush1.msra.mxu0 0.0
    %891 = vmatprep.subr.mxu0 0.0
    %892 = vmatpush1.msra.mxu0 0.0
    %893 = vmatprep.subr.mxu0 0.0
    %894 = vmatpush1.msra.mxu0 0.0
    %895 = vmatprep.subr.mxu0 0.0
    %896 = vmatpush1.msra.mxu0 0.0
    %897 = vmatprep.subr.mxu0 0.0
    %898 = vmatpush1.msra.mxu0 0.0
    %899 = vmatprep.subr.mxu0 0.0
    %900 = vmatpush1.msra.mxu0 0.0
    %901 = vmatprep.subr.mxu0 0.0
    %902 = vmatpush1.msra.mxu0 0.0
    %903 = vmatprep.subr.mxu0 0.0
    %904 = vmatpush1.msra.mxu0 0.0
    %905 = vmatprep.mubr.f32.mxu0 0.0
    %906 = vmatmul.mubr.f32.gmra.mrb[0].mxu0 %v839
    %v907 = vpop.f32.mrb[0].mxu0
    %v908 = vadd.f32 0.0, %v907
    %v909 = vpop.f32.mrb[0].mxu0
    %v910 = vadd.f32 0.0, %v909
    %911 = vdwg.mxu0
    %v912 = vadd.f32 %v910, %v259
    %v913 = vsel %vm262, %v912, -inf
    %914 = vmax.xlane.f32.xlu0 %v913
    %v915 = vpop.xlane.xlu0 %914
    %v916 = vsub.f32 %v912, %v915
    %v917 = vmul.f32 %v916, 1.442695
    %v918 = vpow.pop %v917
    %v919 = vsel %vm262, %v918, 0.0
    %920 = vadd.xlane.f32.xlu0 %v919
    %v921 = vpop.xlane.xlu0 %920
    %v922 = vlog2.pop %v921
    %v923 = vmul.f32 %v922, 0.6931472
    %v924 = vsub.f32 %v916, %v923
    %s925 = scalar_lea.vmem [#allocation7], 10
    %926 = vst [vmem:[%s925] sm:$0x3] %v924
    %v928 = vrot.slane %v908, 4
    %v930 = vadd.f32 %v135, %v928
    %v931 = vxor.u32 %v930, 2147483648
    %v932 = vmul.f32 %v931, 1.442695
    %v933 = vpow.pop %v932
    %v934 = vadd.f32 %v933, 1.0
    %v935 = vrcp.pop %v934
    %v936 = vmul.f32 1.0, %v935
    %v937 = vtanh.pop %v930
    %v939 = vrot.slane %v820, 6
    %v941 = vmul.f32 %v936, %v939
    %943 = vrot.lane.b32.xlu0 %v937, 64
    %v944 = vpop.permute.xlu0 %943
    %v946 = vmul.f32 %v936, %v944
    %948 = vrot.lane.b32.xlu0 %v946, 32
    %v949 = vpop.permute.xlu0 %948
    %v951 = vadd.f32 %v941, %v949
    %v952 = vtanh.pop %v951
    %954 = vrot.lane.b32.xlu0 %v952, 64
    %v955 = vpop.permute.xlu0 %954
    %v957 = vmul.f32 %v936, %v955
    %v958 = vld [vmem:[#allocation4] sm:$0xff]
    %v959 = vld [vmem:[#allocation4 + $0x8] sm:$0xff]
    %v960 = vld [vmem:[#allocation4 + $0x10] sm:$0xff]
    %v961 = vld [vmem:[#allocation4 + $0x18] sm:$0xff]
    %v962 = vld [vmem:[#allocation4 + $0x20] sm:$0xff]
    %v963 = vld [vmem:[#allocation4 + $0x28] sm:$0xff]
    %v964 = vld [vmem:[#allocation4 + $0x30] sm:$0xff]
    %v965 = vld [vmem:[#allocation4 + $0x38] sm:$0xff]
    %v967 = vrot.slane %v957, 4
    %968 = vrot.lane.b32.xlu0 %v967, 32
    %v969 = vpop.permute.xlu0 %968
    %v970 = vsel %vm181, %v969, 0
    %972 = vmatprep.subr.mxu0 %v959
    %973 = vmatpush1.msra.mxu0 %v958
    %974 = vmatprep.subr.mxu0 %v961
    %975 = vmatpush1.msra.mxu0 %v960
    %976 = vmatprep.subr.mxu0 %v963
    %977 = vmatpush1.msra.mxu0 %v962
    %978 = vmatprep.subr.mxu0 %v965
    %979 = vmatpush1.msra.mxu0 %v964
    %980 = vmatprep.subr.mxu0 0.0
    %981 = vmatpush1.msra.mxu0 0.0
    %982 = vmatprep.subr.mxu0 0.0
    %983 = vmatpush1.msra.mxu0 0.0
    %984 = vmatprep.subr.mxu0 0.0
    %985 = vmatpush1.msra.mxu0 0.0
    %986 = vmatprep.subr.mxu0 0.0
    %987 = vmatpush1.msra.mxu0 0.0
    %988 = vmatprep.subr.mxu0 0.0
    %989 = vmatpush1.msra.mxu0 0.0
    %990 = vmatprep.subr.mxu0 0.0
    %991 = vmatpush1.msra.mxu0 0.0
    %992 = vmatprep.subr.mxu0 0.0
    %993 = vmatpush1.msra.mxu0 0.0
    %994 = vmatprep.subr.mxu0 0.0
    %995 = vmatpush1.msra.mxu0 0.0
    %996 = vmatprep.subr.mxu0 0.0
    %997 = vmatpush1.msra.mxu0 0.0
    %998 = vmatprep.subr.mxu0 0.0
    %999 = vmatpush1.msra.mxu0 0.0
    %1000 = vmatprep.subr.mxu0 0.0
    %1001 = vmatpush1.msra.mxu0 0.0
    %1002 = vmatprep.subr.mxu0 0.0
    %1003 = vmatpush1.msra.mxu0 0.0
    %1004 = vmatprep.subr.mxu0 0.0
    %1005 = vmatpush1.msra.mxu0 0.0
    %1006 = vmatprep.subr.mxu0 0.0
    %1007 = vmatpush1.msra.mxu0 0.0
    %1008 = vmatprep.subr.mxu0 0.0
    %1009 = vmatpush1.msra.mxu0 0.0
    %1010 = vmatprep.subr.mxu0 0.0
    %1011 = vmatpush1.msra.mxu0 0.0
    %1012 = vmatprep.subr.mxu0 0.0
    %1013 = vmatpush1.msra.mxu0 0.0
    %1014 = vmatprep.subr.mxu0 0.0
    %1015 = vmatpush1.msra.mxu0 0.0
    %1016 = vmatprep.subr.mxu0 0.0
    %1017 = vmatpush1.msra.mxu0 0.0
    %1018 = vmatprep.subr.mxu0 0.0
    %1019 = vmatpush1.msra.mxu0 0.0
    %1020 = vmatprep.subr.mxu0 0.0
    %1021 = vmatpush1.msra.mxu0 0.0
    %1022 = vmatprep.subr.mxu0 0.0
    %1023 = vmatpush1.msra.mxu0 0.0
    %1024 = vmatprep.subr.mxu0 0.0
    %1025 = vmatpush1.msra.mxu0 0.0
    %1026 = vmatprep.subr.mxu0 0.0
    %1027 = vmatpush1.msra.mxu0 0.0
    %1028 = vmatprep.subr.mxu0 0.0
    %1029 = vmatpush1.msra.mxu0 0.0
    %1030 = vmatprep.subr.mxu0 0.0
    %1031 = vmatpush1.msra.mxu0 0.0
    %1032 = vmatprep.subr.mxu0 0.0
    %1033 = vmatpush1.msra.mxu0 0.0
    %1034 = vmatprep.subr.mxu0 0.0
    %1035 = vmatpush1.msra.mxu0 0.0
    %1036 = vmatprep.mubr.f32.mxu0 0.0
    %1037 = vmatmul.mubr.f32.gmra.mrb[0].mxu0 %v970
    %v1038 = vpop.f32.mrb[0].mxu0
    %v1039 = vadd.f32 0.0, %v1038
    %v1040 = vpop.f32.mrb[0].mxu0
    %v1041 = vadd.f32 0.0, %v1040
    %1042 = vdwg.mxu0
    %v1043 = vadd.f32 %v1041, %v259
    %v1044 = vsel %vm262, %v1043, -inf
    %1045 = vmax.xlane.f32.xlu0 %v1044
    %v1046 = vpop.xlane.xlu0 %1045
    %v1047 = vsub.f32 %v1043, %v1046
    %v1048 = vmul.f32 %v1047, 1.442695
    %v1049 = vpow.pop %v1048
    %v1050 = vsel %vm262, %v1049, 0.0
    %1051 = vadd.xlane.f32.xlu0 %v1050
    %v1052 = vpop.xlane.xlu0 %1051
    %v1053 = vlog2.pop %v1052
    %v1054 = vmul.f32 %v1053, 0.6931472
    %v1055 = vsub.f32 %v1047, %v1054
    %s1056 = scalar_lea.vmem [#allocation7], 12
    %1057 = vst [vmem:[%s1056] sm:$0x3] %v1055
    %v1059 = vrot.slane %v1039, 2
    %v1061 = vadd.f32 %v135, %v1059
    %v1062 = vxor.u32 %v1061, 2147483648
    %v1063 = vmul.f32 %v1062, 1.442695
    %v1064 = vpow.pop %v1063
    %v1065 = vadd.f32 %v1064, 1.0
    %v1066 = vrcp.pop %v1065
    %v1067 = vmul.f32 1.0, %v1066
    %v1068 = vtanh.pop %v1061
    %v1070 = vrot.slane %v951, 6
    %v1072 = vmul.f32 %v1067, %v1070
    %1074 = vrot.lane.b32.xlu0 %v1068, 64
    %v1075 = vpop.permute.xlu0 %1074
    %v1077 = vmul.f32 %v1067, %v1075
    %1079 = vrot.lane.b32.xlu0 %v1077, 32
    %v1080 = vpop.permute.xlu0 %1079
    %v1082 = vadd.f32 %v1072, %v1080
    %v1083 = vtanh.pop %v1082
    %1085 = vrot.lane.b32.xlu0 %v1083, 64
    %v1086 = vpop.permute.xlu0 %1085
    %v1088 = vmul.f32 %v1067, %v1086
    %v1089 = vld [vmem:[#allocation4] sm:$0xff]
    %v1090 = vld [vmem:[#allocation4 + $0x8] sm:$0xff]
    %v1091 = vld [vmem:[#allocation4 + $0x10] sm:$0xff]
    %v1092 = vld [vmem:[#allocation4 + $0x18] sm:$0xff]
    %v1093 = vld [vmem:[#allocation4 + $0x20] sm:$0xff]
    %v1094 = vld [vmem:[#allocation4 + $0x28] sm:$0xff]
    %v1095 = vld [vmem:[#allocation4 + $0x30] sm:$0xff]
    %v1096 = vld [vmem:[#allocation4 + $0x38] sm:$0xff]
    %v1098 = vrot.slane %v1088, 6
    %1099 = vrot.lane.b32.xlu0 %v1098, 32
    %v1100 = vpop.permute.xlu0 %1099
    %v1101 = vsel %vm181, %v1100, 0
    %1103 = vmatprep.subr.mxu0 %v1090
    %1104 = vmatpush1.msra.mxu0 %v1089
    %1105 = vmatprep.subr.mxu0 %v1092
    %1106 = vmatpush1.msra.mxu0 %v1091
    %1107 = vmatprep.subr.mxu0 %v1094
    %1108 = vmatpush1.msra.mxu0 %v1093
    %1109 = vmatprep.subr.mxu0 %v1096
    %1110 = vmatpush1.msra.mxu0 %v1095
    %1111 = vmatprep.subr.mxu0 0.0
    %1112 = vmatpush1.msra.mxu0 0.0
    %1113 = vmatprep.subr.mxu0 0.0
    %1114 = vmatpush1.msra.mxu0 0.0
    %1115 = vmatprep.subr.mxu0 0.0
    %1116 = vmatpush1.msra.mxu0 0.0
    %1117 = vmatprep.subr.mxu0 0.0
    %1118 = vmatpush1.msra.mxu0 0.0
    %1119 = vmatprep.subr.mxu0 0.0
    %1120 = vmatpush1.msra.mxu0 0.0
    %1121 = vmatprep.subr.mxu0 0.0
    %1122 = vmatpush1.msra.mxu0 0.0
    %1123 = vmatprep.subr.mxu0 0.0
    %1124 = vmatpush1.msra.mxu0 0.0
    %1125 = vmatprep.subr.mxu0 0.0
    %1126 = vmatpush1.msra.mxu0 0.0
    %1127 = vmatprep.subr.mxu0 0.0
    %1128 = vmatpush1.msra.mxu0 0.0
    %1129 = vmatprep.subr.mxu0 0.0
    %1130 = vmatpush1.msra.mxu0 0.0
    %1131 = vmatprep.subr.mxu0 0.0
    %1132 = vmatpush1.msra.mxu0 0.0
    %1133 = vmatprep.subr.mxu0 0.0
    %1134 = vmatpush1.msra.mxu0 0.0
    %1135 = vmatprep.subr.mxu0 0.0
    %1136 = vmatpush1.msra.mxu0 0.0
    %1137 = vmatprep.subr.mxu0 0.0
    %1138 = vmatpush1.msra.mxu0 0.0
    %1139 = vmatprep.subr.mxu0 0.0
    %1140 = vmatpush1.msra.mxu0 0.0
    %1141 = vmatprep.subr.mxu0 0.0
    %1142 = vmatpush1.msra.mxu0 0.0
    %1143 = vmatprep.subr.mxu0 0.0
    %1144 = vmatpush1.msra.mxu0 0.0
    %1145 = vmatprep.subr.mxu0 0.0
    %1146 = vmatpush1.msra.mxu0 0.0
    %1147 = vmatprep.subr.mxu0 0.0
    %1148 = vmatpush1.msra.mxu0 0.0
    %1149 = vmatprep.subr.mxu0 0.0
    %1150 = vmatpush1.msra.mxu0 0.0
    %1151 = vmatprep.subr.mxu0 0.0
    %1152 = vmatpush1.msra.mxu0 0.0
    %1153 = vmatprep.subr.mxu0 0.0
    %1154 = vmatpush1.msra.mxu0 0.0
    %1155 = vmatprep.subr.mxu0 0.0
    %1156 = vmatpush1.msra.mxu0 0.0
    %1157 = vmatprep.subr.mxu0 0.0
    %1158 = vmatpush1.msra.mxu0 0.0
    %1159 = vmatprep.subr.mxu0 0.0
    %1160 = vmatpush1.msra.mxu0 0.0
    %1161 = vmatprep.subr.mxu0 0.0
    %1162 = vmatpush1.msra.mxu0 0.0
    %1163 = vmatprep.subr.mxu0 0.0
    %1164 = vmatpush1.msra.mxu0 0.0
    %1165 = vmatprep.subr.mxu0 0.0
    %1166 = vmatpush1.msra.mxu0 0.0
    %1167 = vmatprep.mubr.f32.mxu0 0.0
    %1168 = vmatmul.mubr.f32.gmra.mrb[0].mxu0 %v1101
    %v1169 = vpop.f32.mrb[0].mxu0
    %v1170 = vadd.f32 0.0, %v1169
    %v1171 = vpop.f32.mrb[0].mxu0
    %v1172 = vadd.f32 0.0, %v1171
    %1173 = vdwg.mxu0
    %v1174 = vadd.f32 %v1172, %v259
    %v1175 = vsel %vm262, %v1174, -inf
    %1176 = vmax.xlane.f32.xlu0 %v1175
    %v1177 = vpop.xlane.xlu0 %1176
    %v1178 = vsub.f32 %v1174, %v1177
    %v1179 = vmul.f32 %v1178, 1.442695
    %v1180 = vpow.pop %v1179
    %v1181 = vsel %vm262, %v1180, 0.0
    %1182 = vadd.xlane.f32.xlu0 %v1181
    %v1183 = vpop.xlane.xlu0 %1182
    %v1184 = vlog2.pop %v1183
    %v1185 = vmul.f32 %v1184, 0.6931472
    %v1186 = vsub.f32 %v1178, %v1185
    %s1187 = scalar_lea.vmem [#allocation7], 14
    %1188 = vst [vmem:[%s1187] sm:$0x3] %v1186
    %1190 = vrot.lane.b32.xlu0 %v1082, 96
    %v1191 = vpop.permute.xlu0 %1190
    %vm1193 = vcmask 261126
    %1194 = vst.msk [vmem:[#allocation2 - $0x6] sm:$0xc0] %vm1193, %v1191
    %1195 = vst [vmem:[#allocation3] sm:$0x3] %v1170
    // Predicated region
    $region30: #{tpu_custom_call.1} parent=1 // pred_check
      _
    $region31: #{tpu_custom_call.1} parent=1 // pred_check_branch
      %1197 = sbr.rel (0) target = $region33
    $region32: #{tpu_custom_call.1} parent=1 // pred_region
      %s1199 = ssub.s32 256, 256
      %1200 = vsyncadd [#allocation6], %s1199
      %s1201 = sshll.u32 [#allocation7], 4
      %s1202 = int_to_ptr.vmem [resolvable:$true] %s1201
      %1207 = dma.vmem_to_hbm [thread:$0]  %s1202, 256, %s5, [#allocation6], 32, 32, 2
    $region33: #{tpu_custom_call.1} parent=1 // pred_fallthru
      _
    // Predicated region
    $region34: #{tpu_custom_call.1} parent=1 // pred_check
      _
    $region35: #{tpu_custom_call.1} parent=1 // pred_check_branch
      %1209 = sbr.rel (0) target = $region37
    $region36: #{tpu_custom_call.1} parent=1 // pred_region
      %1210 = dma.done [#allocation6], 256
    $region37: #{tpu_custom_call.1} parent=1 // pred_fallthru
      _
    %1211 = vsyncpa [#allocation5], 1
    %1212 = vsyncpa [#allocation6], 1

</llo_original>
